<compile_context>
chip_gen: v7x
topology: tpu7x:2x2x1
jax: 0.10.0
libtpu: 0.0.40
codegen_flags: <defaults>
</compile_context>

<pallas_src>
import jax
import jax.numpy as jnp
import numpy as np
from jax.experimental import pallas as pl
from jax.experimental.pallas import tpu as pltpu

LANE = 128
SUBLANE = 8


def _round_up(x, m):
    return ((x + m - 1) // m) * m


def _pad2d(x, rows, cols):
    r, c = x.shape
    return jnp.pad(x, ((0, rows - r), (0, cols - c)))


def attention_kernel(h_ref, s_ref, mask_ref, wh_ref, bh_ref, wst_ref, vt_ref,
                     out_ref, ps_scr):
    # h_ref:    (TB, E, TL)  bf16   encoder states, lane-dense in L
    # s_ref:    (TB, D)      f32    decoder state for this batch group
    # mask_ref: (TB, Lp)     f32    full (padded) mask rows, 1.0 = valid
    # wh_ref:   (O, E)       bf16   W_h weight
    # bh_ref:   (1, O)       f32    W_h bias
    # wst_ref:  (D, O)       f32    W_s weight (transposed)
    # vt_ref:   (1, O)       f32    v_t weight
    # out_ref:  (TB, Lp)     f32    resident across L tiles: raw energies
    #                               until the last tile, then the softmax
    # ps_scr:   (O, TB)      f32    W_s(s_t)+b_h, one lane-broadcastable
    #                               column per batch element
    lt = pl.program_id(1)
    n_lt = pl.num_programs(1)
    TB, _, TL = h_ref.shape

    # Decoder projection (+ bias folded in), computed once per batch group.
    @pl.when(lt == 0)
    def _():
        ps = jnp.dot(s_ref[...], wst_ref[...],
                     preferred_element_type=jnp.float32) + bh_ref[...]  # (TB, O)
        ps_scr[...] = ps.T                                              # (O, TB)

    ps = ps_scr[...]
    wh = wh_ref[...]
    vt = vt_ref[...]

    # Energies for this L tile, lane-dense in L (L on the lane axis).
    rows = []
    for b in range(TB):                        # small static batch-group loop
        proj = jnp.dot(wh, h_ref[b],
                       preferred_element_type=jnp.float32)           # (O, TL)
        temp = jnp.tanh(proj + ps[:, b:b + 1])                        # (O, TL)
        rows.append(jnp.dot(vt, temp,
                            preferred_element_type=jnp.float32))     # (1, TL)
    e_tile = jnp.concatenate(rows, axis=0)                            # (TB, TL)

    off = pl.multiple_of(lt * TL, TL)
    out_ref[:, pl.ds(off, TL)] = e_tile

    # Last L tile: masked softmax over the full (resident) energy row.
    @pl.when(lt == n_lt - 1)
    def _():
        energy = out_ref[...]                                         # (TB, Lp)
        valid = mask_ref[...] > 0.0
        masked = jnp.where(valid, energy, jnp.float32(-1e30))
        m = jnp.max(masked, axis=1, keepdims=True)
        p = jnp.exp(masked - m) * valid.astype(jnp.float32)
        denom = jnp.sum(p, axis=1, keepdims=True)
        denom = jnp.maximum(denom, jnp.float32(1e-30))   # all-masked guard
        out_ref[...] = p * pl.reciprocal(denom, approx=True)


def attention_forward(h_all, s_t, mask, params, *, l_tile=None):
    """h_all: (L, B, E), s_t: (B, D), mask: (B, L) with 1.0 = valid.
    Returns attention weights of shape (L, B), softmax over the L axis."""
    L, B, E = h_all.shape
    D = s_t.shape[1]
    wh = params["W_h_w"]            # (O, E)
    bh = params["W_h_b"]            # (O,)
    ws = params["W_s_w"]            # (O, D)
    vt = params["v_t_w"]            # (1, O)
    O = wh.shape[0]

    E_pad = _round_up(E, LANE)      # MXU-aligned contraction dims
    O_pad = _round_up(O, LANE)
    D_pad = _round_up(D, LANE)
    TB = SUBLANE
    B_pad = _round_up(B, TB)

    # L tile: lane-aligned, capped at 512 (bf16 h block ~1 MiB, double-
    # buffered well inside every generation's scoped-VMEM budget).
    if l_tile is None:
        l_tile = min(512, _round_up(L, LANE))
    l_tile = _round_up(l_tile, LANE)
    L_pad = _round_up(L, l_tile)

    # Layout plumbing (wrapper-side, one time):
    h_bel = jnp.transpose(h_all, (1, 2, 0)).astype(jnp.bfloat16)   # (B, E, L)
    h_bel = jnp.pad(h_bel, ((0, B_pad - B), (0, E_pad - E), (0, L_pad - L)))
    s_p = _pad2d(s_t.astype(jnp.float32), B_pad, D_pad)
    mask_p = _pad2d(mask.astype(jnp.float32), B_pad, L_pad)        # stays (B, L)
    wh_p = _pad2d(wh.astype(jnp.float32), O_pad, E_pad).astype(jnp.bfloat16)
    wst_p = _pad2d(ws.T.astype(jnp.float32), D_pad, O_pad)
    bh_p = _pad2d(bh.reshape(1, O).astype(jnp.float32), 1, O_pad)
    vt_p = _pad2d(vt.astype(jnp.float32), 1, O_pad)

    grid = (B_pad // TB, L_pad // l_tile)

    out = pl.pallas_call(
        attention_kernel,
        out_shape=jax.ShapeDtypeStruct((B_pad, L_pad), jnp.float32),
        grid_spec=pltpu.PrefetchScalarGridSpec(
            num_scalar_prefetch=0,
            grid=grid,
            in_specs=[
                pl.BlockSpec((TB, E_pad, l_tile), lambda bt, lt: (bt, 0, lt)),
                pl.BlockSpec((TB, D_pad), lambda bt, lt: (bt, 0)),
                pl.BlockSpec((TB, L_pad), lambda bt, lt: (bt, 0)),
                pl.BlockSpec((O_pad, E_pad), lambda bt, lt: (0, 0)),
                pl.BlockSpec((1, O_pad), lambda bt, lt: (0, 0)),
                pl.BlockSpec((D_pad, O_pad), lambda bt, lt: (0, 0)),
                pl.BlockSpec((1, O_pad), lambda bt, lt: (0, 0)),
            ],
            out_specs=pl.BlockSpec((TB, L_pad), lambda bt, lt: (bt, 0)),
            scratch_shapes=[pltpu.VMEM((O_pad, TB), jnp.float32)],
        ),
        compiler_params=pltpu.CompilerParams(
            dimension_semantics=("parallel", "arbitrary")),
    )(h_bel, s_p, mask_p, wh_p, bh_p, wst_p, vt_p)

    # Slice off padding and return the module's (L, B) layout.
    return out[:B, :L].T


def init_params(key, enc_hdim, dec_hdim, odim):
    """Deterministic init, shapes match nn.Linear in the module."""
    k1, k2, k3, k4 = jax.random.split(key, 4)
    lim_h = 1.0 / np.sqrt(enc_hdim)
    lim_s = 1.0 / np.sqrt(dec_hdim)
    lim_v = 1.0 / np.sqrt(odim)
    return {
        "W_h_w": jax.random.uniform(k1, (odim, enc_hdim), jnp.float32,
                                    -lim_h, lim_h),
        "W_h_b": jax.random.uniform(k2, (odim,), jnp.float32, -lim_h, lim_h),
        "W_s_w": jax.random.uniform(k3, (odim, dec_hdim), jnp.float32,
                                    -lim_s, lim_s),
        "v_t_w": jax.random.uniform(k4, (1, odim), jnp.float32, -lim_v, lim_v),
    }


def attention_ref(h_all, s_t, mask, params):
    """Pure-JAX (f32) reference mirroring the PyTorch forward."""
    wh, bh, ws, vt = (params["W_h_w"], params["W_h_b"],
                      params["W_s_w"], params["v_t_w"])
    proj = (jnp.einsum("lbe,oe->lbo", h_all, wh) + bh
            + jnp.einsum("bd,od->bo", s_t, ws)[None, :, :])
    temp = jnp.tanh(proj)
    energy = jnp.einsum("lbo,o->lb", temp, vt[0])
    m = mask.T
    valid = m > 0
    masked = jnp.where(valid, energy, -1e30)
    p = jnp.exp(masked - masked.max(0, keepdims=True)) * valid
    # TODO(synk): tu.masked_softmax source unavailable; implemented the
    # standard "masked positions get zero probability" softmax over dim=0.
    return p / p.sum(0, keepdims=True)


if __name__ == "__main__":
    L, B = 8, 2                # seq len, batch
    enc_hdim, dec_hdim, odim = 32, 16, 32

    key = jax.random.PRNGKey(0)
    kp, kh, ks = jax.random.split(key, 3)
    params = init_params(kp, enc_hdim, dec_hdim, odim)

    h_all = jax.random.normal(kh, (L, B, enc_hdim), jnp.float32)
    s_t = jax.random.normal(ks, (B, dec_hdim), jnp.float32)
    # valid lengths per batch element: 8 and 5
    lengths = jnp.array([8, 5], dtype=jnp.int32)
    mask = (jnp.arange(L)[None, :] < lengths[:, None]).astype(jnp.float32)  # (B, L)

    attn = attention_forward(h_all, s_t, mask, params)
    attn = jax.block_until_ready(attn)

    ref = attention_ref(h_all, s_t, mask, params)
    # bf16 h/W_h stream + approximate reciprocal -> modest tolerances vs. the
    # pure-f32 reference.
    np.testing.assert_allclose(np.asarray(attn), np.asarray(ref),
                               rtol=2e-2, atol=2e-2)
    # per-column probabilities sum to ~1 (approx reciprocal in the kernel)
    np.testing.assert_allclose(np.asarray(attn).sum(axis=0),
                               np.ones(B), rtol=0.0, atol=5e-3)
    # masked positions get exactly zero probability
    assert float(np.abs(np.asarray(attn)[5:, 1]).max()) == 0.0
    print("KERNEL_OK")
</pallas_src>

<mosaic_0001>
module attributes {stable_mosaic.version = 11 : i64} {
  func.func @attention_kernel(%arg0: i32, %arg1: i32, %arg2: memref<8x128x128xbf16, #tpu.memory_space<vmem>>, %arg3: memref<8x128xf32, #tpu.memory_space<vmem>>, %arg4: memref<8x128xf32, #tpu.memory_space<vmem>>, %arg5: memref<128x128xbf16, #tpu.memory_space<vmem>>, %arg6: memref<1x128xf32, #tpu.memory_space<vmem>>, %arg7: memref<128x128xf32, #tpu.memory_space<vmem>>, %arg8: memref<1x128xf32, #tpu.memory_space<vmem>>, %arg9: memref<8x128xf32, #tpu.memory_space<vmem>>, %arg10: memref<128x8xf32, #tpu.memory_space<vmem>>) attributes {dimension_semantics = [#tpu.dimension_semantics<parallel>, #tpu.dimension_semantics<arbitrary>], iteration_bounds = array<i64: 1, 1>, scalar_prefetch = 0 : i64, scratch_operands = 1 : i64, tpu.core_type = #tpu.core_type<tc>, window_params = [{transform_indices = @transform_0, window_bounds = array<i64: 8, 128, 128>}, {transform_indices = @transform_1, window_bounds = array<i64: 8, 128>}, {transform_indices = @transform_2, window_bounds = array<i64: 8, 128>}, {pipeline_mode = #tpu.pipeline_mode<synchronous>, transform_indices = @transform_3, window_bounds = array<i64: 128, 128>}, {pipeline_mode = #tpu.pipeline_mode<synchronous>, transform_indices = @transform_4, window_bounds = array<i64: 1, 128>}, {pipeline_mode = #tpu.pipeline_mode<synchronous>, transform_indices = @transform_5, window_bounds = array<i64: 128, 128>}, {pipeline_mode = #tpu.pipeline_mode<synchronous>, transform_indices = @transform_6, window_bounds = array<i64: 1, 128>}, {transform_indices = @transform_7, window_bounds = array<i64: 8, 128>}]} {
    %c0_i32 = arith.constant 0 : i32
    %0 = arith.cmpi eq, %arg1, %c0_i32 : i32
    %1 = arith.extui %0 : i1 to i32
    %c0_i32_0 = arith.constant 0 : i32
    %2 = arith.cmpi ne, %1, %c0_i32_0 : i32
    scf.if %2 {
      %c0_41 = arith.constant 0 : index
      %c0_42 = arith.constant 0 : index
      %78 = vector.load %arg3[%c0_41, %c0_42] : memref<8x128xf32, #tpu.memory_space<vmem>>, vector<8x128xf32>
      %c0_43 = arith.constant 0 : index
      %c0_44 = arith.constant 0 : index
      %79 = vector.load %arg7[%c0_43, %c0_44] : memref<128x128xf32, #tpu.memory_space<vmem>>, vector<128x128xf32>
      %cst_45 = arith.constant dense<0.000000e+00> : vector<8x128xf32>
      %80 = tpu.matmul %78, %79, %cst_45 {dimension_numbers = #tpu.dot_dimension_numbers<[1], [0], [0], [1], [0, 0, 1, 1], [], []>} : vector<8x128xf32>, vector<128x128xf32>, vector<8x128xf32> -> vector<8x128xf32>
      %c0_46 = arith.constant 0 : index
      %c0_47 = arith.constant 0 : index
      %81 = vector.load %arg6[%c0_46, %c0_47] : memref<1x128xf32, #tpu.memory_space<vmem>>, vector<1x128xf32>
      %82 = vector.broadcast %81 : vector<1x128xf32> to vector<8x128xf32>
      %83 = arith.addf %80, %82 : vector<8x128xf32>
      %84 = tpu.transpose %83, [1, 0] : vector<8x128xf32> -> vector<128x8xf32>
      %c0_48 = arith.constant 0 : index
      %c0_49 = arith.constant 0 : index
      %85 = vector.load %arg10[%c0_48, %c0_49] : memref<128x8xf32, #tpu.memory_space<vmem>>, vector<128x8xf32>
      tpu.vector_store %arg10[%c0_48, %c0_49], %84 {strides = array<i32>} : memref<128x8xf32, #tpu.memory_space<vmem>>, vector<128x8xf32>,
    } else {
    }
    %c0 = arith.constant 0 : index
    %c0_1 = arith.constant 0 : index
    %3 = vector.load %arg10[%c0, %c0_1] : memref<128x8xf32, #tpu.memory_space<vmem>>, vector<128x8xf32>
    %c0_2 = arith.constant 0 : index
    %c0_3 = arith.constant 0 : index
    %4 = vector.load %arg5[%c0_2, %c0_3] : memref<128x128xbf16, #tpu.memory_space<vmem>>, vector<128x128xbf16>
    %c0_4 = arith.constant 0 : index
    %c0_5 = arith.constant 0 : index
    %5 = vector.load %arg8[%c0_4, %c0_5] : memref<1x128xf32, #tpu.memory_space<vmem>>, vector<1x128xf32>
    %c0_6 = arith.constant 0 : index
    %c0_7 = arith.constant 0 : index
    %c0_8 = arith.constant 0 : index
    %6 = vector.load %arg2[%c0_6, %c0_7, %c0_8] : memref<8x128x128xbf16, #tpu.memory_space<vmem>>, vector<1x128x128xbf16>
    %7 = vector.shape_cast %6 : vector<1x128x128xbf16> to vector<128x128xbf16>
    %cst = arith.constant dense<0.000000e+00> : vector<128x128xf32>
    %8 = tpu.matmul %4, %7, %cst {dimension_numbers = #tpu.dot_dimension_numbers<[1], [0], [0], [1], [0, 0, 1, 1], [], []>} : vector<128x128xbf16>, vector<128x128xbf16>, vector<128x128xf32> -> vector<128x128xf32>
    %9 = vector.extract_strided_slice %3 {offsets = [0, 0], sizes = [128, 1], strides = [1, 1]} : vector<128x8xf32> to vector<128x1xf32>
    %10 = vector.broadcast %9 : vector<128x1xf32> to vector<128x128xf32>
    %11 = arith.addf %8, %10 : vector<128x128xf32>
    %12 = math.tanh %11 : vector<128x128xf32>
    %cst_9 = arith.constant dense<0.000000e+00> : vector<1x128xf32>
    %13 = tpu.matmul %5, %12, %cst_9 {dimension_numbers = #tpu.dot_dimension_numbers<[1], [0], [0], [1], [0, 0, 1, 1], [], []>} : vector<1x128xf32>, vector<128x128xf32>, vector<1x128xf32> -> vector<1x128xf32>
    %c1 = arith.constant 1 : index
    %c0_10 = arith.constant 0 : index
    %c0_11 = arith.constant 0 : index
    %14 = vector.load %arg2[%c1, %c0_10, %c0_11] : memref<8x128x128xbf16, #tpu.memory_space<vmem>>, vector<1x128x128xbf16>
    %15 = vector.shape_cast %14 : vector<1x128x128xbf16> to vector<128x128xbf16>
    %cst_12 = arith.constant dense<0.000000e+00> : vector<128x128xf32>
    %16 = tpu.matmul %4, %15, %cst_12 {dimension_numbers = #tpu.dot_dimension_numbers<[1], [0], [0], [1], [0, 0, 1, 1], [], []>} : vector<128x128xbf16>, vector<128x128xbf16>, vector<128x128xf32> -> vector<128x128xf32>
    %17 = vector.extract_strided_slice %3 {offsets = [0, 1], sizes = [128, 1], strides = [1, 1]} : vector<128x8xf32> to vector<128x1xf32>
    %18 = vector.broadcast %17 : vector<128x1xf32> to vector<128x128xf32>
    %19 = arith.addf %16, %18 : vector<128x128xf32>
    %20 = math.tanh %19 : vector<128x128xf32>
    %cst_13 = arith.constant dense<0.000000e+00> : vector<1x128xf32>
    %21 = tpu.matmul %5, %20, %cst_13 {dimension_numbers = #tpu.dot_dimension_numbers<[1], [0], [0], [1], [0, 0, 1, 1], [], []>} : vector<1x128xf32>, vector<128x128xf32>, vector<1x128xf32> -> vector<1x128xf32>
    %c2 = arith.constant 2 : index
    %c0_14 = arith.constant 0 : index
    %c0_15 = arith.constant 0 : index
    %22 = vector.load %arg2[%c2, %c0_14, %c0_15] : memref<8x128x128xbf16, #tpu.memory_space<vmem>>, vector<1x128x128xbf16>
    %23 = vector.shape_cast %22 : vector<1x128x128xbf16> to vector<128x128xbf16>
    %cst_16 = arith.constant dense<0.000000e+00> : vector<128x128xf32>
    %24 = tpu.matmul %4, %23, %cst_16 {dimension_numbers = #tpu.dot_dimension_numbers<[1], [0], [0], [1], [0, 0, 1, 1], [], []>} : vector<128x128xbf16>, vector<128x128xbf16>, vector<128x128xf32> -> vector<128x128xf32>
    %25 = vector.extract_strided_slice %3 {offsets = [0, 2], sizes = [128, 1], strides = [1, 1]} : vector<128x8xf32> to vector<128x1xf32>
    %26 = vector.broadcast %25 : vector<128x1xf32> to vector<128x128xf32>
    %27 = arith.addf %24, %26 : vector<128x128xf32>
    %28 = math.tanh %27 : vector<128x128xf32>
    %cst_17 = arith.constant dense<0.000000e+00> : vector<1x128xf32>
    %29 = tpu.matmul %5, %28, %cst_17 {dimension_numbers = #tpu.dot_dimension_numbers<[1], [0], [0], [1], [0, 0, 1, 1], [], []>} : vector<1x128xf32>, vector<128x128xf32>, vector<1x128xf32> -> vector<1x128xf32>
    %c3 = arith.constant 3 : index
    %c0_18 = arith.constant 0 : index
    %c0_19 = arith.constant 0 : index
    %30 = vector.load %arg2[%c3, %c0_18, %c0_19] : memref<8x128x128xbf16, #tpu.memory_space<vmem>>, vector<1x128x128xbf16>
    %31 = vector.shape_cast %30 : vector<1x128x128xbf16> to vector<128x128xbf16>
    %cst_20 = arith.constant dense<0.000000e+00> : vector<128x128xf32>
    %32 = tpu.matmul %4, %31, %cst_20 {dimension_numbers = #tpu.dot_dimension_numbers<[1], [0], [0], [1], [0, 0, 1, 1], [], []>} : vector<128x128xbf16>, vector<128x128xbf16>, vector<128x128xf32> -> vector<128x128xf32>
    %33 = vector.extract_strided_slice %3 {offsets = [0, 3], sizes = [128, 1], strides = [1, 1]} : vector<128x8xf32> to vector<128x1xf32>
    %34 = vector.broadcast %33 : vector<128x1xf32> to vector<128x128xf32>
    %35 = arith.addf %32, %34 : vector<128x128xf32>
    %36 = math.tanh %35 : vector<128x128xf32>
    %cst_21 = arith.constant dense<0.000000e+00> : vector<1x128xf32>
    %37 = tpu.matmul %5, %36, %cst_21 {dimension_numbers = #tpu.dot_dimension_numbers<[1], [0], [0], [1], [0, 0, 1, 1], [], []>} : vector<1x128xf32>, vector<128x128xf32>, vector<1x128xf32> -> vector<1x128xf32>
    %c4 = arith.constant 4 : index
    %c0_22 = arith.constant 0 : index
    %c0_23 = arith.constant 0 : index
    %38 = vector.load %arg2[%c4, %c0_22, %c0_23] : memref<8x128x128xbf16, #tpu.memory_space<vmem>>, vector<1x128x128xbf16>
    %39 = vector.shape_cast %38 : vector<1x128x128xbf16> to vector<128x128xbf16>
    %cst_24 = arith.constant dense<0.000000e+00> : vector<128x128xf32>
    %40 = tpu.matmul %4, %39, %cst_24 {dimension_numbers = #tpu.dot_dimension_numbers<[1], [0], [0], [1], [0, 0, 1, 1], [], []>} : vector<128x128xbf16>, vector<128x128xbf16>, vector<128x128xf32> -> vector<128x128xf32>
    %41 = vector.extract_strided_slice %3 {offsets = [0, 4], sizes = [128, 1], strides = [1, 1]} : vector<128x8xf32> to vector<128x1xf32>
    %42 = vector.broadcast %41 : vector<128x1xf32> to vector<128x128xf32>
    %43 = arith.addf %40, %42 : vector<128x128xf32>
    %44 = math.tanh %43 : vector<128x128xf32>
    %cst_25 = arith.constant dense<0.000000e+00> : vector<1x128xf32>
    %45 = tpu.matmul %5, %44, %cst_25 {dimension_numbers = #tpu.dot_dimension_numbers<[1], [0], [0], [1], [0, 0, 1, 1], [], []>} : vector<1x128xf32>, vector<128x128xf32>, vector<1x128xf32> -> vector<1x128xf32>
    %c5 = arith.constant 5 : index
    %c0_26 = arith.constant 0 : index
    %c0_27 = arith.constant 0 : index
    %46 = vector.load %arg2[%c5, %c0_26, %c0_27] : memref<8x128x128xbf16, #tpu.memory_space<vmem>>, vector<1x128x128xbf16>
    %47 = vector.shape_cast %46 : vector<1x128x128xbf16> to vector<128x128xbf16>
    %cst_28 = arith.constant dense<0.000000e+00> : vector<128x128xf32>
    %48 = tpu.matmul %4, %47, %cst_28 {dimension_numbers = #tpu.dot_dimension_numbers<[1], [0], [0], [1], [0, 0, 1, 1], [], []>} : vector<128x128xbf16>, vector<128x128xbf16>, vector<128x128xf32> -> vector<128x128xf32>
    %49 = vector.extract_strided_slice %3 {offsets = [0, 5], sizes = [128, 1], strides = [1, 1]} : vector<128x8xf32> to vector<128x1xf32>
    %50 = vector.broadcast %49 : vector<128x1xf32> to vector<128x128xf32>
    %51 = arith.addf %48, %50 : vector<128x128xf32>
    %52 = math.tanh %51 : vector<128x128xf32>
    %cst_29 = arith.constant dense<0.000000e+00> : vector<1x128xf32>
    %53 = tpu.matmul %5, %52, %cst_29 {dimension_numbers = #tpu.dot_dimension_numbers<[1], [0], [0], [1], [0, 0, 1, 1], [], []>} : vector<1x128xf32>, vector<128x128xf32>, vector<1x128xf32> -> vector<1x128xf32>
    %c6 = arith.constant 6 : index
    %c0_30 = arith.constant 0 : index
    %c0_31 = arith.constant 0 : index
    %54 = vector.load %arg2[%c6, %c0_30, %c0_31] : memref<8x128x128xbf16, #tpu.memory_space<vmem>>, vector<1x128x128xbf16>
    %55 = vector.shape_cast %54 : vector<1x128x128xbf16> to vector<128x128xbf16>
    %cst_32 = arith.constant dense<0.000000e+00> : vector<128x128xf32>
    %56 = tpu.matmul %4, %55, %cst_32 {dimension_numbers = #tpu.dot_dimension_numbers<[1], [0], [0], [1], [0, 0, 1, 1], [], []>} : vector<128x128xbf16>, vector<128x128xbf16>, vector<128x128xf32> -> vector<128x128xf32>
    %57 = vector.extract_strided_slice %3 {offsets = [0, 6], sizes = [128, 1], strides = [1, 1]} : vector<128x8xf32> to vector<128x1xf32>
    %58 = vector.broadcast %57 : vector<128x1xf32> to vector<128x128xf32>
    %59 = arith.addf %56, %58 : vector<128x128xf32>
    %60 = math.tanh %59 : vector<128x128xf32>
    %cst_33 = arith.constant dense<0.000000e+00> : vector<1x128xf32>
    %61 = tpu.matmul %5, %60, %cst_33 {dimension_numbers = #tpu.dot_dimension_numbers<[1], [0], [0], [1], [0, 0, 1, 1], [], []>} : vector<1x128xf32>, vector<128x128xf32>, vector<1x128xf32> -> vector<1x128xf32>
    %c7 = arith.constant 7 : index
    %c0_34 = arith.constant 0 : index
    %c0_35 = arith.constant 0 : index
    %62 = vector.load %arg2[%c7, %c0_34, %c0_35] : memref<8x128x128xbf16, #tpu.memory_space<vmem>>, vector<1x128x128xbf16>
    %63 = vector.shape_cast %62 : vector<1x128x128xbf16> to vector<128x128xbf16>
    %cst_36 = arith.constant dense<0.000000e+00> : vector<128x128xf32>
    %64 = tpu.matmul %4, %63, %cst_36 {dimension_numbers = #tpu.dot_dimension_numbers<[1], [0], [0], [1], [0, 0, 1, 1], [], []>} : vector<128x128xbf16>, vector<128x128xbf16>, vector<128x128xf32> -> vector<128x128xf32>
    %65 = vector.extract_strided_slice %3 {offsets = [0, 7], sizes = [128, 1], strides = [1, 1]} : vector<128x8xf32> to vector<128x1xf32>
    %66 = vector.broadcast %65 : vector<128x1xf32> to vector<128x128xf32>
    %67 = arith.addf %64, %66 : vector<128x128xf32>
    %68 = math.tanh %67 : vector<128x128xf32>
    %cst_37 = arith.constant dense<0.000000e+00> : vector<1x128xf32>
    %69 = tpu.matmul %5, %68, %cst_37 {dimension_numbers = #tpu.dot_dimension_numbers<[1], [0], [0], [1], [0, 0, 1, 1], [], []>} : vector<1x128xf32>, vector<128x128xf32>, vector<1x128xf32> -> vector<1x128xf32>
    %70 = tpu.concatenate %13, %21, %29, %37, %45, %53, %61, %69 in 0 : vector<1x128xf32>, vector<1x128xf32>, vector<1x128xf32>, vector<1x128xf32>, vector<1x128xf32>, vector<1x128xf32>, vector<1x128xf32>, vector<1x128xf32> -> vector<8x128xf32>
    %c128_i32 = arith.constant 128 : i32
    %71 = arith.muli %arg1, %c128_i32 : i32
    %72 = tpu.assume_multiple %71, 128 : i32
    %c0_38 = arith.constant 0 : index
    %73 = arith.index_cast %72 : i32 to index
    %74 = vector.load %arg9[%c0_38, %73] : memref<8x128xf32, #tpu.memory_space<vmem>>, vector<8x128xf32>
    tpu.vector_store %arg9[%c0_38, %73], %70 {strides = array<i32>} : memref<8x128xf32, #tpu.memory_space<vmem>>, vector<8x128xf32>,
    %c0_i32_39 = arith.constant 0 : i32
    %75 = arith.cmpi eq, %arg1, %c0_i32_39 : i32
    %76 = arith.extui %75 : i1 to i32
    %c0_i32_40 = arith.constant 0 : i32
    %77 = arith.cmpi ne, %76, %c0_i32_40 : i32
    scf.if %77 {
      %c0_41 = arith.constant 0 : index
      %c0_42 = arith.constant 0 : index
      %78 = vector.load %arg9[%c0_41, %c0_42] : memref<8x128xf32, #tpu.memory_space<vmem>>, vector<8x128xf32>
      %c0_43 = arith.constant 0 : index
      %c0_44 = arith.constant 0 : index
      %79 = vector.load %arg4[%c0_43, %c0_44] : memref<8x128xf32, #tpu.memory_space<vmem>>, vector<8x128xf32>
      %cst_45 = arith.constant 0.000000e+00 : f32
      %80 = vector.broadcast %cst_45 : f32 to vector<8x128xf32>
      %81 = arith.cmpf ogt, %79, %80 : vector<8x128xf32>
      %cst_46 = arith.constant -1.000000e+30 : f32
      %82 = vector.broadcast %cst_46 : f32 to vector<8x128xf32>
      %83 = arith.select %81, %78, %82 : vector<8x128xi1>, vector<8x128xf32>
      %cst_47 = arith.constant dense<0xFF800000> : vector<8xf32>
      %84 = vector.multi_reduction <maximumf>, %83, %cst_47 [1] : vector<8x128xf32> to vector<8xf32>
      %85 = vector.shape_cast %84 : vector<8xf32> to vector<8x1xf32>
      %86 = vector.broadcast %85 : vector<8x1xf32> to vector<8x128xf32>
      %87 = arith.subf %83, %86 : vector<8x128xf32>
      %88 = math.exp %87 : vector<8x128xf32>
      %89 = arith.extui %81 : vector<8x128xi1> to vector<8x128xi32>
      %90 = arith.sitofp %89 : vector<8x128xi32> to vector<8x128xf32>
      %91 = arith.mulf %88, %90 : vector<8x128xf32>
      %cst_48 = arith.constant dense<0.000000e+00> : vector<8xf32>
      %92 = vector.multi_reduction <add>, %91, %cst_48 [1] : vector<8x128xf32> to vector<8xf32>
      %93 = vector.shape_cast %92 : vector<8xf32> to vector<8x1xf32>
      %cst_49 = arith.constant 1.000000e-30 : f32
      %94 = vector.broadcast %cst_49 : f32 to vector<8x1xf32>
      %95 = arith.maximumf %93, %94 : vector<8x1xf32>
      %96 = tpu.reciprocal %95 {approx = true} : vector<8x1xf32> -> vector<8x1xf32>
      %97 = vector.broadcast %96 : vector<8x1xf32> to vector<8x128xf32>
      %98 = arith.mulf %91, %97 : vector<8x128xf32>
      %c0_50 = arith.constant 0 : index
      %c0_51 = arith.constant 0 : index
      %99 = vector.load %arg9[%c0_50, %c0_51] : memref<8x128xf32, #tpu.memory_space<vmem>>, vector<8x128xf32>
      tpu.vector_store %arg9[%c0_50, %c0_51], %98 {strides = array<i32>} : memref<8x128xf32, #tpu.memory_space<vmem>>, vector<8x128xf32>,
    } else {
    }
    return
  }
  func.func @transform_0(%arg0: i32, %arg1: i32) -> (i32, i32, i32) {
    %c0_i32 = arith.constant 0 : i32
    %c0_i32_0 = arith.constant 0 : i32
    return %arg0, %c0_i32, %arg1 : i32, i32, i32
  }
  func.func @transform_1(%arg0: i32, %arg1: i32) -> (i32, i32) {
    %c0_i32 = arith.constant 0 : i32
    %c0_i32_0 = arith.constant 0 : i32
    return %arg0, %c0_i32 : i32, i32
  }
  func.func @transform_2(%arg0: i32, %arg1: i32) -> (i32, i32) {
    %c0_i32 = arith.constant 0 : i32
    %c0_i32_0 = arith.constant 0 : i32
    return %arg0, %c0_i32 : i32, i32
  }
  func.func @transform_3(%arg0: i32, %arg1: i32) -> (i32, i32) {
    %c0_i32 = arith.constant 0 : i32
    %c0_i32_0 = arith.constant 0 : i32
    %c0_i32_1 = arith.constant 0 : i32
    return %c0_i32, %c0_i32_0 : i32, i32
  }
  func.func @transform_4(%arg0: i32, %arg1: i32) -> (i32, i32) {
    %c0_i32 = arith.constant 0 : i32
    %c0_i32_0 = arith.constant 0 : i32
    %c0_i32_1 = arith.constant 0 : i32
    return %c0_i32, %c0_i32_0 : i32, i32
  }
  func.func @transform_5(%arg0: i32, %arg1: i32) -> (i32, i32) {
    %c0_i32 = arith.constant 0 : i32
    %c0_i32_0 = arith.constant 0 : i32
    %c0_i32_1 = arith.constant 0 : i32
    return %c0_i32, %c0_i32_0 : i32, i32
  }
  func.func @transform_6(%arg0: i32, %arg1: i32) -> (i32, i32) {
    %c0_i32 = arith.constant 0 : i32
    %c0_i32_0 = arith.constant 0 : i32
    %c0_i32_1 = arith.constant 0 : i32
    return %c0_i32, %c0_i32_0 : i32, i32
  }
  func.func @transform_7(%arg0: i32, %arg1: i32) -> (i32, i32) {
    %c0_i32 = arith.constant 0 : i32
    %c0_i32_0 = arith.constant 0 : i32
    return %arg0, %c0_i32 : i32, i32
  }
}

</mosaic_0001>

<llo_original>
// kernel: tpu_custom_call.1
$region0: #{tpu_custom_call.1}
  #allocation0 [shape = 'u32[]', space=smem, size = 0x4, offset = 0x4, fixed_abs, tag = 'smem constant byte address 0x4 - core index']
  #allocation1 [shape = 'u32[144,128]{1,0:T(1,128)}', space=vmem, size = 0x12000, scoped, tag = 'internal scratch']
  #allocation2 [shape = 'f32[128,8]{1,0:T(8,128)}', space=vmem, size = 0x10000, scoped, tag = 'scratch operand']
  %s0 = inlined_call_operand.hbm [shape: bf16[8,128,128], index: 0, kind: input, shape index: {}]
  %s1 = inlined_call_operand.hbm [shape: f32[8,128], index: 1, kind: input, shape index: {}]
  %s2 = inlined_call_operand.hbm [shape: f32[8,128], index: 2, kind: input, shape index: {}]
  %s3 = inlined_call_operand.hbm [shape: bf16[128,128], index: 3, kind: input, shape index: {}]
  %s4 = inlined_call_operand.vmem [shape: f32[1,128], index: 4, kind: input, shape index: {}]
  %s5 = inlined_call_operand.hbm [shape: f32[128,128], index: 5, kind: input, shape index: {}]
  %s6 = inlined_call_operand.vmem [shape: f32[1,128], index: 6, kind: input, shape index: {}]
  %s7 = inlined_call_operand.hbm [shape: f32[8,128], index: 7, kind: output, shape index: {}]
  %s8 = sld [smem:[#allocation0]]
  $region66: #{tpu_custom_call.1} parent=0
    _
  %s10 = ssub.s32 1, %s8
  %s11 = scalar_select 0, %s10, %s8
  $region1: #{tpu_custom_call.1} parent=0
    #allocation3 [shape = 'u8[262144]{0}', space=vmem, size = 0x40000, scoped, tag = 'input window, operand 0, single buffered']
    #allocation4 [shape = 's32[1]{0}', space=sflag, size = 0x4, scoped, tag = 'scoped memory for tpu_custom_call.1']
    #allocation5 [shape = 's32[1]{0}', space=sflag, size = 0x4, scoped, tag = 'scoped memory for tpu_custom_call.1']
    #allocation6 [shape = 'u8[4096]{0}', space=vmem, size = 0x1000, scoped, tag = 'input window, operand 1, single buffered']
    #allocation7 [shape = 's32[1]{0}', space=sflag, size = 0x4, scoped, tag = 'scoped memory for tpu_custom_call.1']
    #allocation8 [shape = 'u8[4096]{0}', space=vmem, size = 0x1000, scoped, tag = 'input window, operand 2, single buffered']
    #allocation9 [shape = 'u8[32768]{0}', space=vmem, size = 0x8000, scoped, tag = 'input window, operand 3, single buffered']
    #allocation10 [shape = 's32[1]{0}', space=sflag, size = 0x4, scoped, tag = 'scoped memory for tpu_custom_call.1']
    #allocation11 [shape = 'u8[65536]{0}', space=vmem, size = 0x10000, scoped, tag = 'input window, operand 5, single buffered']
    #allocation12 [shape = 'u8[4096]{0}', space=vmem, size = 0x1000, scoped, tag = 'output window, operand 0, single buffered']
    %12 = vsyncpa [#allocation4], 0
    %13 = vsyncpa [#allocation7], 0
    %14 = vsyncpa [#allocation10], 0
    %15 = vsyncpa [#allocation5], 0
    // Predicated region
    $region2: #{tpu_custom_call.1} parent=1 // pred_check
      _
    $region3: #{tpu_custom_call.1} parent=1 // pred_check_branch
      %17 = sbr.rel (0) target = $region5
    $region4: #{tpu_custom_call.1} parent=1 // pred_region
      %s19 = ssub.s32 8192, 8192
      %20 = vsyncadd [#allocation4], %s19
      %s21 = sshll.u32 [#allocation3], 4
      %s22 = int_to_ptr.vmem [resolvable:$true] %s21
      %27 = dma.hbm_to_vmem [thread:$0]  %s0, 8192, %s22, [#allocation4], 64, 64, 4
    $region5: #{tpu_custom_call.1} parent=1 // pred_fallthru
      _
    // Predicated region
    $region6: #{tpu_custom_call.1} parent=1 // pred_check
      _
    $region7: #{tpu_custom_call.1} parent=1 // pred_check_branch
      %29 = sbr.rel (0) target = $region9
    $region8: #{tpu_custom_call.1} parent=1 // pred_region
      %s31 = ssub.s32 128, 128
      %32 = vsyncadd [#allocation7], %s31
      %s34 = sshll.u32 [#allocation6], 4
      %s35 = int_to_ptr.vmem [resolvable:$true] %s34
      %37 = dma.hbm_to_vmem [thread:$0]  %s1, 128, %s35, [#allocation7]
    $region9: #{tpu_custom_call.1} parent=1 // pred_fallthru
      _
    // Predicated region
    $region10: #{tpu_custom_call.1} parent=1 // pred_check
      _
    $region11: #{tpu_custom_call.1} parent=1 // pred_check_branch
      %39 = sbr.rel (0) target = $region13
    $region12: #{tpu_custom_call.1} parent=1 // pred_region
      %s41 = ssub.s32 128, 128
      %42 = vsyncadd [#allocation7], %s41
      %s44 = sshll.u32 [#allocation8], 4
      %s45 = int_to_ptr.vmem [resolvable:$true] %s44
      %47 = dma.hbm_to_vmem [thread:$0]  %s2, 128, %s45, [#allocation7]
    $region13: #{tpu_custom_call.1} parent=1 // pred_fallthru
      _
    // Predicated region
    $region14: #{tpu_custom_call.1} parent=1 // pred_check
      _
    $region15: #{tpu_custom_call.1} parent=1 // pred_check_branch
      %49 = sbr.rel (0) target = $region17
    $region16: #{tpu_custom_call.1} parent=1 // pred_region
      %s51 = ssub.s32 1024, 1024
      %52 = vsyncadd [#allocation10], %s51
      %s53 = sshll.u32 [#allocation9], 4
      %s54 = int_to_ptr.vmem [resolvable:$true] %s53
      %59 = dma.hbm_to_vmem [thread:$0]  %s3, 1024, %s54, [#allocation10], 64, 64, 4
    $region17: #{tpu_custom_call.1} parent=1 // pred_fallthru
      _
    // Predicated region
    $region18: #{tpu_custom_call.1} parent=1 // pred_check
      _
    $region19: #{tpu_custom_call.1} parent=1 // pred_check_branch
      %61 = sbr.rel (0) target = $region21
    $region20: #{tpu_custom_call.1} parent=1 // pred_region
      _
    $region21: #{tpu_custom_call.1} parent=1 // pred_fallthru
      _
    // Predicated region
    $region22: #{tpu_custom_call.1} parent=1 // pred_check
      _
    $region23: #{tpu_custom_call.1} parent=1 // pred_check_branch
      %63 = sbr.rel (0) target = $region25
    $region24: #{tpu_custom_call.1} parent=1 // pred_region
      %s65 = ssub.s32 2048, 2048
      %66 = vsyncadd [#allocation10], %s65
      %s67 = sshll.u32 [#allocation11], 4
      %s68 = int_to_ptr.vmem [resolvable:$true] %s67
      %73 = dma.hbm_to_vmem [thread:$0]  %s5, 2048, %s68, [#allocation10], 128, 128, 8
    $region25: #{tpu_custom_call.1} parent=1 // pred_fallthru
      _
    // Predicated region
    $region26: #{tpu_custom_call.1} parent=1 // pred_check
      _
    $region27: #{tpu_custom_call.1} parent=1 // pred_check_branch
      %75 = sbr.rel (0) target = $region29
    $region28: #{tpu_custom_call.1} parent=1 // pred_region
      _
    $region29: #{tpu_custom_call.1} parent=1 // pred_fallthru
      _
    // Predicated region
    $region30: #{tpu_custom_call.1} parent=1 // pred_check
      _
    $region31: #{tpu_custom_call.1} parent=1 // pred_check_branch
      %77 = sbr.rel (0) target = $region33
    $region32: #{tpu_custom_call.1} parent=1 // pred_region
      %78 = dma.done [#allocation4], 8192
    $region33: #{tpu_custom_call.1} parent=1 // pred_fallthru
      _
    // Predicated region
    $region34: #{tpu_custom_call.1} parent=1 // pred_check
      _
    $region35: #{tpu_custom_call.1} parent=1 // pred_check_branch
      %80 = sbr.rel (0) target = $region37
    $region36: #{tpu_custom_call.1} parent=1 // pred_region
      %81 = dma.done [#allocation7], 128
    $region37: #{tpu_custom_call.1} parent=1 // pred_fallthru
      _
    // Predicated region
    $region38: #{tpu_custom_call.1} parent=1 // pred_check
      _
    $region39: #{tpu_custom_call.1} parent=1 // pred_check_branch
      %83 = sbr.rel (0) target = $region41
    $region40: #{tpu_custom_call.1} parent=1 // pred_region
      %84 = dma.done [#allocation7], 128
    $region41: #{tpu_custom_call.1} parent=1 // pred_fallthru
      _
    // Predicated region
    $region42: #{tpu_custom_call.1} parent=1 // pred_check
      _
    $region43: #{tpu_custom_call.1} parent=1 // pred_check_branch
      %86 = sbr.rel (0) target = $region45
    $region44: #{tpu_custom_call.1} parent=1 // pred_region
      %87 = dma.done [#allocation10], 1024
    $region45: #{tpu_custom_call.1} parent=1 // pred_fallthru
      _
    // Predicated region
    $region46: #{tpu_custom_call.1} parent=1 // pred_check
      _
    $region47: #{tpu_custom_call.1} parent=1 // pred_check_branch
      %89 = sbr.rel (0) target = $region49
    $region48: #{tpu_custom_call.1} parent=1 // pred_region
      %90 = dma.done [#allocation10], 2048
    $region49: #{tpu_custom_call.1} parent=1 // pred_fallthru
      _
    %p92 = scmp.eq.s32.totalorder 0, 0
    // Predicated region
    $region50: #{tpu_custom_call.1} parent=1 // pred_check
      %p93 = pneg %p92
    $region51: #{tpu_custom_call.1} parent=1 // pred_check_branch
      %95 = sbr.rel (%p93) target = $region53
    $region52: #{tpu_custom_call.1} parent=1 // pred_region
      %v96 = vld [vmem:[#allocation6] sm:$0xff]
      %v97 = vld [vmem:[#allocation11] sm:$0xff]
      %v98 = vld [vmem:[#allocation11 + $0x8] sm:$0xff]
      %v99 = vld [vmem:[#allocation11 + $0x10] sm:$0xff]
      %v100 = vld [vmem:[#allocation11 + $0x18] sm:$0xff]
      %v101 = vld [vmem:[#allocation11 + $0x20] sm:$0xff]
      %v102 = vld [vmem:[#allocation11 + $0x28] sm:$0xff]
      %v103 = vld [vmem:[#allocation11 + $0x30] sm:$0xff]
      %v104 = vld [vmem:[#allocation11 + $0x38] sm:$0xff]
      %v105 = vld [vmem:[#allocation11 + $0x40] sm:$0xff]
      %v106 = vld [vmem:[#allocation11 + $0x48] sm:$0xff]
      %v107 = vld [vmem:[#allocation11 + $0x50] sm:$0xff]
      %v108 = vld [vmem:[#allocation11 + $0x58] sm:$0xff]
      %v109 = vld [vmem:[#allocation11 + $0x60] sm:$0xff]
      %v110 = vld [vmem:[#allocation11 + $0x68] sm:$0xff]
      %v111 = vld [vmem:[#allocation11 + $0x70] sm:$0xff]
      %v112 = vld [vmem:[#allocation11 + $0x78] sm:$0xff]
      %v113 = vld [vmem:[%s4] sm:$0x1]
      %v115 = vlaneseq
      %v116 = vshrl.u32 %v115, 7
      %v117 = vsub.s32 0, %v116
      %v118 = vrot.slane %v113, %v117
      %120 = vmatprep.subr.mxu0 0.0
      %121 = vmatpush1.msra.mxu0 %v97
      %122 = vmatprep.subr.mxu0 0.0
      %123 = vmatpush1.msra.mxu0 %v98
      %124 = vmatprep.subr.mxu0 0.0
      %125 = vmatpush1.msra.mxu0 %v99
      %126 = vmatprep.subr.mxu0 0.0
      %127 = vmatpush1.msra.mxu0 %v100
      %128 = vmatprep.subr.mxu0 0.0
      %129 = vmatpush1.msra.mxu0 %v101
      %130 = vmatprep.subr.mxu0 0.0
      %131 = vmatpush1.msra.mxu0 %v102
      %132 = vmatprep.subr.mxu0 0.0
      %133 = vmatpush1.msra.mxu0 %v103
      %134 = vmatprep.subr.mxu0 0.0
      %135 = vmatpush1.msra.mxu0 %v104
      %136 = vmatprep.subr.mxu0 0.0
      %137 = vmatpush1.msra.mxu0 %v105
      %138 = vmatprep.subr.mxu0 0.0
      %139 = vmatpush1.msra.mxu0 %v106
      %140 = vmatprep.subr.mxu0 0.0
      %141 = vmatpush1.msra.mxu0 %v107
      %142 = vmatprep.subr.mxu0 0.0
      %143 = vmatpush1.msra.mxu0 %v108
      %144 = vmatprep.subr.mxu0 0.0
      %145 = vmatpush1.msra.mxu0 %v109
      %146 = vmatprep.subr.mxu0 0.0
      %147 = vmatpush1.msra.mxu0 %v110
      %148 = vmatprep.subr.mxu0 0.0
      %149 = vmatpush1.msra.mxu0 %v111
      %150 = vmatprep.subr.mxu0 0.0
      %151 = vmatpush1.msra.mxu0 %v112
      %152 = vmatprep.subr.mxu0 0.0
      %153 = vmatpush1.msra.mxu0 0.0
      %154 = vmatprep.subr.mxu0 0.0
      %155 = vmatpush1.msra.mxu0 0.0
      %156 = vmatprep.subr.mxu0 0.0
      %157 = vmatpush1.msra.mxu0 0.0
      %158 = vmatprep.subr.mxu0 0.0
      %159 = vmatpush1.msra.mxu0 0.0
      %160 = vmatprep.subr.mxu0 0.0
      %161 = vmatpush1.msra.mxu0 0.0
      %162 = vmatprep.subr.mxu0 0.0
      %163 = vmatpush1.msra.mxu0 0.0
      %164 = vmatprep.subr.mxu0 0.0
      %165 = vmatpush1.msra.mxu0 0.0
      %166 = vmatprep.subr.mxu0 0.0
      %167 = vmatpush1.msra.mxu0 0.0
      %168 = vmatprep.subr.mxu0 0.0
      %169 = vmatpush1.msra.mxu0 0.0
      %170 = vmatprep.subr.mxu0 0.0
      %171 = vmatpush1.msra.mxu0 0.0
      %172 = vmatprep.subr.mxu0 0.0
      %173 = vmatpush1.msra.mxu0 0.0
      %174 = vmatprep.subr.mxu0 0.0
      %175 = vmatpush1.msra.mxu0 0.0
      %176 = vmatprep.subr.mxu0 0.0
      %177 = vmatpush1.msra.mxu0 0.0
      %178 = vmatprep.subr.mxu0 0.0
      %179 = vmatpush1.msra.mxu0 0.0
      %180 = vmatprep.subr.mxu0 0.0
      %181 = vmatpush1.msra.mxu0 0.0
      %182 = vmatprep.subr.mxu0 0.0
      %183 = vmatpush1.msra.mxu0 0.0
      %184 = vmatprep.mubr.f32.mxu0 0.0
      %185 = vmatmul.mubr.f32.gmra.mrb[0].mxu0 %v96
      %v186 = vpop.f32.mrb[0].mxu0
      %v187 = vadd.f32 %v118, %v186
      %v188 = vpop.f32.mrb[0].mxu0
      %189 = vdwg.mxu0
      %190 = vxpose.xlu0.b32.start [1/16] %v187, 128
      %191 = vxpose.xlu0.b32.cont [2/16] 0.0, 128
      %192 = vxpose.xlu0.b32.cont [3/16] 0.0, 128
      %193 = vxpose.xlu0.b32.cont [4/16] 0.0, 128
      %194 = vxpose.xlu0.b32.cont [5/16] 0.0, 128
      %195 = vxpose.xlu0.b32.cont [6/16] 0.0, 128
      %196 = vxpose.xlu0.b32.cont [7/16] 0.0, 128
      %197 = vxpose.xlu0.b32.cont [8/16] 0.0, 128
      %198 = vxpose.xlu0.b32.cont [9/16] 0.0, 128
      %199 = vxpose.xlu0.b32.cont [10/16] 0.0, 128
      %200 = vxpose.xlu0.b32.cont [11/16] 0.0, 128
      %201 = vxpose.xlu0.b32.cont [12/16] 0.0, 128
      %202 = vxpose.xlu0.b32.cont [13/16] 0.0, 128
      %203 = vxpose.xlu0.b32.cont [14/16] 0.0, 128
      %204 = vxpose.xlu0.b32.cont [15/16] 0.0, 128
      %205 = vxpose.xlu0.b32.end [16/16] 0.0, 128
      %v206 = vpop.trf.xlu0
      %v207 = vpop.trf.xlu0
      %v208 = vpop.trf.xlu0
      %v209 = vpop.trf.xlu0
      %v210 = vpop.trf.xlu0
      %v211 = vpop.trf.xlu0
      %v212 = vpop.trf.xlu0
      %v213 = vpop.trf.xlu0
      %v214 = vpop.trf.xlu0
      %v215 = vpop.trf.xlu0
      %v216 = vpop.trf.xlu0
      %v217 = vpop.trf.xlu0
      %v218 = vpop.trf.xlu0
      %v219 = vpop.trf.xlu0
      %v220 = vpop.trf.xlu0
      %v221 = vpop.trf.xlu0
      %vm222 = vcmask 64512
      %223 = vst.msk [vmem:[#allocation2] sm:$0xff] %vm222, %v206
      %224 = vst.msk [vmem:[#allocation2 + $0x8] sm:$0xff] %vm222, %v207
      %225 = vst.msk [vmem:[#allocation2 + $0x10] sm:$0xff] %vm222, %v208
      %226 = vst.msk [vmem:[#allocation2 + $0x18] sm:$0xff] %vm222, %v209
      %227 = vst.msk [vmem:[#allocation2 + $0x20] sm:$0xff] %vm222, %v210
      %228 = vst.msk [vmem:[#allocation2 + $0x28] sm:$0xff] %vm222, %v211
      %229 = vst.msk [vmem:[#allocation2 + $0x30] sm:$0xff] %vm222, %v212
      %230 = vst.msk [vmem:[#allocation2 + $0x38] sm:$0xff] %vm222, %v213
      %231 = vst.msk [vmem:[#allocation2 + $0x40] sm:$0xff] %vm222, %v214
      %232 = vst.msk [vmem:[#allocation2 + $0x48] sm:$0xff] %vm222, %v215
      %233 = vst.msk [vmem:[#allocation2 + $0x50] sm:$0xff] %vm222, %v216
      %234 = vst.msk [vmem:[#allocation2 + $0x58] sm:$0xff] %vm222, %v217
      %235 = vst.msk [vmem:[#allocation2 + $0x60] sm:$0xff] %vm222, %v218
      %236 = vst.msk [vmem:[#allocation2 + $0x68] sm:$0xff] %vm222, %v219
      %237 = vst.msk [vmem:[#allocation2 + $0x70] sm:$0xff] %vm222, %v220
      %238 = vst.msk [vmem:[#allocation2 + $0x78] sm:$0xff] %vm222, %v221
    $region53: #{tpu_custom_call.1} parent=1 // pred_fallthru
      _
    %v239 = vld [vmem:[#allocation2] sm:$0xff]
    %v240 = vld [vmem:[#allocation2 + $0x8] sm:$0xff]
    %v241 = vld [vmem:[#allocation2 + $0x10] sm:$0xff]
    %v242 = vld [vmem:[#allocation2 + $0x18] sm:$0xff]
    %v243 = vld [vmem:[#allocation2 + $0x20] sm:$0xff]
    %v244 = vld [vmem:[#allocation2 + $0x28] sm:$0xff]
    %v245 = vld [vmem:[#allocation2 + $0x30] sm:$0xff]
    %v246 = vld [vmem:[#allocation2 + $0x38] sm:$0xff]
    %v247 = vld [vmem:[#allocation2 + $0x40] sm:$0xff]
    %v248 = vld [vmem:[#allocation2 + $0x48] sm:$0xff]
    %v249 = vld [vmem:[#allocation2 + $0x50] sm:$0xff]
    %v250 = vld [vmem:[#allocation2 + $0x58] sm:$0xff]
    %v251 = vld [vmem:[#allocation2 + $0x60] sm:$0xff]
    %v252 = vld [vmem:[#allocation2 + $0x68] sm:$0xff]
    %v253 = vld [vmem:[#allocation2 + $0x70] sm:$0xff]
    %v254 = vld [vmem:[#allocation2 + $0x78] sm:$0xff]
    %v255 = vld [vmem:[#allocation9] sm:$0xf]
    %v256 = vld [vmem:[#allocation9 + $0x4] sm:$0xf]
    %v257 = vld [vmem:[#allocation9 + $0x8] sm:$0xf]
    %v258 = vld [vmem:[#allocation9 + $0xc] sm:$0xf]
    %v259 = vld [vmem:[#allocation9 + $0x10] sm:$0xf]
    %v260 = vld [vmem:[#allocation9 + $0x14] sm:$0xf]
    %v261 = vld [vmem:[#allocation9 + $0x18] sm:$0xf]
    %v262 = vld [vmem:[#allocation9 + $0x1c] sm:$0xf]
    %v263 = vld [vmem:[#allocation9 + $0x20] sm:$0xf]
    %v264 = vld [vmem:[#allocation9 + $0x24] sm:$0xf]
    %v265 = vld [vmem:[#allocation9 + $0x28] sm:$0xf]
    %v266 = vld [vmem:[#allocation9 + $0x2c] sm:$0xf]
    %v267 = vld [vmem:[#allocation9 + $0x30] sm:$0xf]
    %v268 = vld [vmem:[#allocation9 + $0x34] sm:$0xf]
    %v269 = vld [vmem:[#allocation9 + $0x38] sm:$0xf]
    %v270 = vld [vmem:[#allocation9 + $0x3c] sm:$0xf]
    %v271 = vld [vmem:[%s6] sm:$0x1]
    %v272 = vld [vmem:[#allocation3] sm:$0xf]
    %v273 = vld [vmem:[#allocation3 + $0x4] sm:$0xf]
    %v274 = vld [vmem:[#allocation3 + $0x8] sm:$0xf]
    %v275 = vld [vmem:[#allocation3 + $0xc] sm:$0xf]
    %v276 = vld [vmem:[#allocation3 + $0x10] sm:$0xf]
    %v277 = vld [vmem:[#allocation3 + $0x14] sm:$0xf]
    %v278 = vld [vmem:[#allocation3 + $0x18] sm:$0xf]
    %v279 = vld [vmem:[#allocation3 + $0x1c] sm:$0xf]
    %v280 = vld [vmem:[#allocation3 + $0x20] sm:$0xf]
    %v281 = vld [vmem:[#allocation3 + $0x24] sm:$0xf]
    %v282 = vld [vmem:[#allocation3 + $0x28] sm:$0xf]
    %v283 = vld [vmem:[#allocation3 + $0x2c] sm:$0xf]
    %v284 = vld [vmem:[#allocation3 + $0x30] sm:$0xf]
    %v285 = vld [vmem:[#allocation3 + $0x34] sm:$0xf]
    %v286 = vld [vmem:[#allocation3 + $0x38] sm:$0xf]
    %v287 = vld [vmem:[#allocation3 + $0x3c] sm:$0xf]
    %289 = vset.pattern.permute.xlu0 0
    %290 = vperm.xlu0 %289, %v239
    %v291 = vpop.permute.xlu0 %290
    %294 = vset.pattern.permute.xlu0 0
    %295 = vperm.xlu0 %294, %v240
    %v296 = vpop.permute.xlu0 %295
    %299 = vset.pattern.permute.xlu0 0
    %300 = vperm.xlu0 %299, %v241
    %v301 = vpop.permute.xlu0 %300
    %304 = vset.pattern.permute.xlu0 0
    %305 = vperm.xlu0 %304, %v242
    %v306 = vpop.permute.xlu0 %305
    %309 = vset.pattern.permute.xlu0 0
    %310 = vperm.xlu0 %309, %v243
    %v311 = vpop.permute.xlu0 %310
    %314 = vset.pattern.permute.xlu0 0
    %315 = vperm.xlu0 %314, %v244
    %v316 = vpop.permute.xlu0 %315
    %319 = vset.pattern.permute.xlu0 0
    %320 = vperm.xlu0 %319, %v245
    %v321 = vpop.permute.xlu0 %320
    %324 = vset.pattern.permute.xlu0 0
    %325 = vperm.xlu0 %324, %v246
    %v326 = vpop.permute.xlu0 %325
    %329 = vset.pattern.permute.xlu0 0
    %330 = vperm.xlu0 %329, %v247
    %v331 = vpop.permute.xlu0 %330
    %334 = vset.pattern.permute.xlu0 0
    %335 = vperm.xlu0 %334, %v248
    %v336 = vpop.permute.xlu0 %335
    %339 = vset.pattern.permute.xlu0 0
    %340 = vperm.xlu0 %339, %v249
    %v341 = vpop.permute.xlu0 %340
    %344 = vset.pattern.permute.xlu0 0
    %345 = vperm.xlu0 %344, %v250
    %v346 = vpop.permute.xlu0 %345
    %349 = vset.pattern.permute.xlu0 0
    %350 = vperm.xlu0 %349, %v251
    %v351 = vpop.permute.xlu0 %350
    %354 = vset.pattern.permute.xlu0 0
    %355 = vperm.xlu0 %354, %v252
    %v356 = vpop.permute.xlu0 %355
    %359 = vset.pattern.permute.xlu0 0
    %360 = vperm.xlu0 %359, %v253
    %v361 = vpop.permute.xlu0 %360
    %364 = vset.pattern.permute.xlu0 0
    %365 = vperm.xlu0 %364, %v254
    %v366 = vpop.permute.xlu0 %365
    %v384 = vunpack.c.l.b16 %v255
    %v385 = vunpack.c.l.b16 %v256
    %v386 = vunpack.c.l.b16 %v257
    %v387 = vunpack.c.l.b16 %v258
    %v388 = vunpack.c.l.b16 %v259
    %v389 = vunpack.c.l.b16 %v260
    %v390 = vunpack.c.l.b16 %v261
    %v391 = vunpack.c.l.b16 %v262
    %v392 = vunpack.c.l.b16 %v263
    %v393 = vunpack.c.l.b16 %v264
    %v394 = vunpack.c.l.b16 %v265
    %v395 = vunpack.c.l.b16 %v266
    %v396 = vunpack.c.l.b16 %v267
    %v397 = vunpack.c.l.b16 %v268
    %v398 = vunpack.c.l.b16 %v269
    %v399 = vunpack.c.l.b16 %v270
    %v400 = vpack.c.b16 %v385, %v384
    %v401 = vpack.c.b16 %v387, %v386
    %v402 = vpack.c.b16 %v389, %v388
    %v403 = vpack.c.b16 %v391, %v390
    %v404 = vpack.c.b16 %v393, %v392
    %v405 = vpack.c.b16 %v395, %v394
    %v406 = vpack.c.b16 %v397, %v396
    %v407 = vpack.c.b16 %v399, %v398
    %v432 = vunpack.c.l.b16 %v272
    %v433 = vunpack.c.l.b16 %v273
    %v434 = vunpack.c.l.b16 %v274
    %v435 = vunpack.c.l.b16 %v275
    %v436 = vunpack.c.l.b16 %v276
    %v437 = vunpack.c.l.b16 %v277
    %v438 = vunpack.c.l.b16 %v278
    %v439 = vunpack.c.l.b16 %v279
    %v440 = vunpack.c.l.b16 %v280
    %v441 = vunpack.c.l.b16 %v281
    %v442 = vunpack.c.l.b16 %v282
    %v443 = vunpack.c.l.b16 %v283
    %v444 = vunpack.c.l.b16 %v284
    %v445 = vunpack.c.l.b16 %v285
    %v446 = vunpack.c.l.b16 %v286
    %v447 = vunpack.c.l.b16 %v287
    %v448 = vpack.c.b16 %v433, %v432
    %v449 = vpack.c.b16 %v435, %v434
    %v450 = vpack.c.b16 %v437, %v436
    %v451 = vpack.c.b16 %v439, %v438
    %v452 = vpack.c.b16 %v441, %v440
    %v453 = vpack.c.b16 %v443, %v442
    %v454 = vpack.c.b16 %v445, %v444
    %v455 = vpack.c.b16 %v447, %v446
    %464 = vmatprep.subr.bf16.mxu0 0
    %465 = vmatpush1.bf16.msra.mxu0 %v448
    %466 = vmatprep.subr.bf16.mxu0 0
    %467 = vmatpush1.bf16.msra.mxu0 %v449
    %468 = vmatprep.subr.bf16.mxu0 0
    %469 = vmatpush1.bf16.msra.mxu0 %v450
    %470 = vmatprep.subr.bf16.mxu0 0
    %471 = vmatpush1.bf16.msra.mxu0 %v451
    %472 = vmatprep.subr.bf16.mxu0 0
    %473 = vmatpush1.bf16.msra.mxu0 %v452
    %474 = vmatprep.subr.bf16.mxu0 0
    %475 = vmatpush1.bf16.msra.mxu0 %v453
    %476 = vmatprep.subr.bf16.mxu0 0
    %477 = vmatpush1.bf16.msra.mxu0 %v454
    %478 = vmatprep.subr.bf16.mxu0 0
    %479 = vmatpush1.bf16.msra.mxu0 %v455
    %480 = vmatprep.subr.bf16.mxu0 0
    %481 = vmatpush1.bf16.msra.mxu0 0
    %482 = vmatprep.subr.bf16.mxu0 0
    %483 = vmatpush1.bf16.msra.mxu0 0
    %484 = vmatprep.subr.bf16.mxu0 0
    %485 = vmatpush1.bf16.msra.mxu0 0
    %486 = vmatprep.subr.bf16.mxu0 0
    %487 = vmatpush1.bf16.msra.mxu0 0
    %488 = vmatprep.subr.bf16.mxu0 0
    %489 = vmatpush1.bf16.msra.mxu0 0
    %490 = vmatprep.subr.bf16.mxu0 0
    %491 = vmatpush1.bf16.msra.mxu0 0
    %492 = vmatprep.subr.bf16.mxu0 0
    %493 = vmatpush1.bf16.msra.mxu0 0
    %494 = vmatprep.subr.bf16.mxu0 0
    %495 = vmatpush1.bf16.msra.mxu0 0
    %496 = vmatprep.mubr.bf16.mxu0 0
    %497 = vmatmul.mubr.bf16.gmra.mrb[0].mxu0 %v400
    %v498 = vpop.f32.mrb[0].mxu0
    %v499 = vadd.f32 %v291, %v498
    %v500 = vpop.f32.mrb[0].mxu0
    %v501 = vpop.f32.mrb[0].mxu0
    %v502 = vadd.f32 %v296, %v501
    %v503 = vpop.f32.mrb[0].mxu0
    %504 = vmatprep.mubr.bf16.mxu0 0
    %505 = vmatmul.mubr.bf16.gmra.mrb[0].mxu0 %v401
    %v506 = vpop.f32.mrb[0].mxu0
    %v507 = vadd.f32 %v301, %v506
    %v508 = vpop.f32.mrb[0].mxu0
    %v509 = vpop.f32.mrb[0].mxu0
    %v510 = vadd.f32 %v306, %v509
    %v511 = vpop.f32.mrb[0].mxu0
    %512 = vmatprep.mubr.bf16.mxu0 0
    %513 = vmatmul.mubr.bf16.gmra.mrb[0].mxu0 %v402
    %v514 = vpop.f32.mrb[0].mxu0
    %v515 = vadd.f32 %v311, %v514
    %v516 = vpop.f32.mrb[0].mxu0
    %v517 = vpop.f32.mrb[0].mxu0
    %v518 = vadd.f32 %v316, %v517
    %v519 = vpop.f32.mrb[0].mxu0
    %520 = vmatprep.mubr.bf16.mxu0 0
    %521 = vmatmul.mubr.bf16.gmra.mrb[0].mxu0 %v403
    %v522 = vpop.f32.mrb[0].mxu0
    %v523 = vadd.f32 %v321, %v522
    %v524 = vpop.f32.mrb[0].mxu0
    %v525 = vpop.f32.mrb[0].mxu0
    %v526 = vadd.f32 %v326, %v525
    %v527 = vpop.f32.mrb[0].mxu0
    %528 = vmatprep.mubr.bf16.mxu0 0
    %529 = vmatmul.mubr.bf16.gmra.mrb[0].mxu0 %v404
    %v530 = vpop.f32.mrb[0].mxu0
    %v531 = vadd.f32 %v331, %v530
    %v532 = vpop.f32.mrb[0].mxu0
    %v533 = vpop.f32.mrb[0].mxu0
    %v534 = vadd.f32 %v336, %v533
    %v535 = vpop.f32.mrb[0].mxu0
    %536 = vmatprep.mubr.bf16.mxu0 0
    %537 = vmatmul.mubr.bf16.gmra.mrb[0].mxu0 %v405
    %v538 = vpop.f32.mrb[0].mxu0
    %v539 = vadd.f32 %v341, %v538
    %v540 = vpop.f32.mrb[0].mxu0
    %v541 = vpop.f32.mrb[0].mxu0
    %v542 = vadd.f32 %v346, %v541
    %v543 = vpop.f32.mrb[0].mxu0
    %544 = vmatprep.mubr.bf16.mxu0 0
    %545 = vmatmul.mubr.bf16.gmra.mrb[0].mxu0 %v406
    %v546 = vpop.f32.mrb[0].mxu0
    %v547 = vadd.f32 %v351, %v546
    %v548 = vpop.f32.mrb[0].mxu0
    %v549 = vpop.f32.mrb[0].mxu0
    %v550 = vadd.f32 %v356, %v549
    %v551 = vpop.f32.mrb[0].mxu0
    %552 = vmatprep.mubr.bf16.mxu0 0
    %553 = vmatmul.mubr.bf16.gmra.mrb[0].mxu0 %v407
    %v554 = vpop.f32.mrb[0].mxu0
    %v555 = vadd.f32 %v361, %v554
    %v556 = vpop.f32.mrb[0].mxu0
    %v557 = vpop.f32.mrb[0].mxu0
    %v558 = vadd.f32 %v366, %v557
    %v559 = vpop.f32.mrb[0].mxu0
    %560 = vdwg.mxu0
    %v561 = vtanh.pop %v499
    %v562 = vtanh.pop %v502
    %v563 = vtanh.pop %v507
    %v564 = vtanh.pop %v510
    %v565 = vtanh.pop %v515
    %v566 = vtanh.pop %v518
    %v567 = vtanh.pop %v523
    %v568 = vtanh.pop %v526
    %v569 = vtanh.pop %v531
    %v570 = vtanh.pop %v534
    %v571 = vtanh.pop %v539
    %v572 = vtanh.pop %v542
    %v573 = vtanh.pop %v547
    %v574 = vtanh.pop %v550
    %v575 = vtanh.pop %v555
    %v576 = vtanh.pop %v558
    %577 = vmatprep.subr.mxu0 0.0
    %578 = vmatpush1.msra.mxu0 %v561
    %579 = vmatprep.subr.mxu0 0.0
    %580 = vmatpush1.msra.mxu0 %v562
    %581 = vmatprep.subr.mxu0 0.0
    %582 = vmatpush1.msra.mxu0 %v563
    %583 = vmatprep.subr.mxu0 0.0
    %584 = vmatpush1.msra.mxu0 %v564
    %585 = vmatprep.subr.mxu0 0.0
    %586 = vmatpush1.msra.mxu0 %v565
    %587 = vmatprep.subr.mxu0 0.0
    %588 = vmatpush1.msra.mxu0 %v566
    %589 = vmatprep.subr.mxu0 0.0
    %590 = vmatpush1.msra.mxu0 %v567
    %591 = vmatprep.subr.mxu0 0.0
    %592 = vmatpush1.msra.mxu0 %v568
    %593 = vmatprep.subr.mxu0 0.0
    %594 = vmatpush1.msra.mxu0 %v569
    %595 = vmatprep.subr.mxu0 0.0
    %596 = vmatpush1.msra.mxu0 %v570
    %597 = vmatprep.subr.mxu0 0.0
    %598 = vmatpush1.msra.mxu0 %v571
    %599 = vmatprep.subr.mxu0 0.0
    %600 = vmatpush1.msra.mxu0 %v572
    %601 = vmatprep.subr.mxu0 0.0
    %602 = vmatpush1.msra.mxu0 %v573
    %603 = vmatprep.subr.mxu0 0.0
    %604 = vmatpush1.msra.mxu0 %v574
    %605 = vmatprep.subr.mxu0 0.0
    %606 = vmatpush1.msra.mxu0 %v575
    %607 = vmatprep.subr.mxu0 0.0
    %608 = vmatpush1.msra.mxu0 %v576
    %609 = vmatprep.subr.mxu0 0.0
    %610 = vmatpush1.msra.mxu0 0.0
    %611 = vmatprep.subr.mxu0 0.0
    %612 = vmatpush1.msra.mxu0 0.0
    %613 = vmatprep.subr.mxu0 0.0
    %614 = vmatpush1.msra.mxu0 0.0
    %615 = vmatprep.subr.mxu0 0.0
    %616 = vmatpush1.msra.mxu0 0.0
    %617 = vmatprep.subr.mxu0 0.0
    %618 = vmatpush1.msra.mxu0 0.0
    %619 = vmatprep.subr.mxu0 0.0
    %620 = vmatpush1.msra.mxu0 0.0
    %621 = vmatprep.subr.mxu0 0.0
    %622 = vmatpush1.msra.mxu0 0.0
    %623 = vmatprep.subr.mxu0 0.0
    %624 = vmatpush1.msra.mxu0 0.0
    %625 = vmatprep.subr.mxu0 0.0
    %626 = vmatpush1.msra.mxu0 0.0
    %627 = vmatprep.subr.mxu0 0.0
    %628 = vmatpush1.msra.mxu0 0.0
    %629 = vmatprep.subr.mxu0 0.0
    %630 = vmatpush1.msra.mxu0 0.0
    %631 = vmatprep.subr.mxu0 0.0
    %632 = vmatpush1.msra.mxu0 0.0
    %633 = vmatprep.subr.mxu0 0.0
    %634 = vmatpush1.msra.mxu0 0.0
    %635 = vmatprep.subr.mxu0 0.0
    %636 = vmatpush1.msra.mxu0 0.0
    %637 = vmatprep.subr.mxu0 0.0
    %638 = vmatpush1.msra.mxu0 0.0
    %639 = vmatprep.subr.mxu0 0.0
    %640 = vmatpush1.msra.mxu0 0.0
    %641 = vmatprep.mubr.f32.mxu0 0.0
    %642 = vmatmul.mubr.f32.gmra.mrb[0].mxu0 %v271
    %v643 = vpop.f32.mrb[0].mxu0
    %v644 = vadd.f32 0.0, %v643
    %v645 = vpop.f32.mrb[0].mxu0
    %646 = vdwg.mxu0
    %s647 = scalar_lea.vmem [#allocation3], 64
    %v648 = vld [vmem:[%s647] sm:$0xf]
    %v649 = vld [vmem:[%s647 + $0x4] sm:$0xf]
    %v650 = vld [vmem:[%s647 + $0x8] sm:$0xf]
    %v651 = vld [vmem:[%s647 + $0xc] sm:$0xf]
    %v652 = vld [vmem:[%s647 + $0x10] sm:$0xf]
    %v653 = vld [vmem:[%s647 + $0x14] sm:$0xf]
    %v654 = vld [vmem:[%s647 + $0x18] sm:$0xf]
    %v655 = vld [vmem:[%s647 + $0x1c] sm:$0xf]
    %v656 = vld [vmem:[%s647 + $0x20] sm:$0xf]
    %v657 = vld [vmem:[%s647 + $0x24] sm:$0xf]
    %v658 = vld [vmem:[%s647 + $0x28] sm:$0xf]
    %v659 = vld [vmem:[%s647 + $0x2c] sm:$0xf]
    %v660 = vld [vmem:[%s647 + $0x30] sm:$0xf]
    %v661 = vld [vmem:[%s647 + $0x34] sm:$0xf]
    %v662 = vld [vmem:[%s647 + $0x38] sm:$0xf]
    %v663 = vld [vmem:[%s647 + $0x3c] sm:$0xf]
    %664 = vset.pattern.permute.xlu0 1
    %665 = vperm.xlu0 %664, %v239
    %v666 = vpop.permute.xlu0 %665
    %668 = vset.pattern.permute.xlu0 1
    %669 = vperm.xlu0 %668, %v240
    %v670 = vpop.permute.xlu0 %669
    %672 = vset.pattern.permute.xlu0 1
    %673 = vperm.xlu0 %672, %v241
    %v674 = vpop.permute.xlu0 %673
    %676 = vset.pattern.permute.xlu0 1
    %677 = vperm.xlu0 %676, %v242
    %v678 = vpop.permute.xlu0 %677
    %680 = vset.pattern.permute.xlu0 1
    %681 = vperm.xlu0 %680, %v243
    %v682 = vpop.permute.xlu0 %681
    %684 = vset.pattern.permute.xlu0 1
    %685 = vperm.xlu0 %684, %v244
    %v686 = vpop.permute.xlu0 %685
    %688 = vset.pattern.permute.xlu0 1
    %689 = vperm.xlu0 %688, %v245
    %v690 = vpop.permute.xlu0 %689
    %692 = vset.pattern.permute.xlu0 1
    %693 = vperm.xlu0 %692, %v246
    %v694 = vpop.permute.xlu0 %693
    %696 = vset.pattern.permute.xlu0 1
    %697 = vperm.xlu0 %696, %v247
    %v698 = vpop.permute.xlu0 %697
    %700 = vset.pattern.permute.xlu0 1
    %701 = vperm.xlu0 %700, %v248
    %v702 = vpop.permute.xlu0 %701
    %704 = vset.pattern.permute.xlu0 1
    %705 = vperm.xlu0 %704, %v249
    %v706 = vpop.permute.xlu0 %705
    %708 = vset.pattern.permute.xlu0 1
    %709 = vperm.xlu0 %708, %v250
    %v710 = vpop.permute.xlu0 %709
    %712 = vset.pattern.permute.xlu0 1
    %713 = vperm.xlu0 %712, %v251
    %v714 = vpop.permute.xlu0 %713
    %716 = vset.pattern.permute.xlu0 1
    %717 = vperm.xlu0 %716, %v252
    %v718 = vpop.permute.xlu0 %717
    %720 = vset.pattern.permute.xlu0 1
    %721 = vperm.xlu0 %720, %v253
    %v722 = vpop.permute.xlu0 %721
    %724 = vset.pattern.permute.xlu0 1
    %725 = vperm.xlu0 %724, %v254
    %v726 = vpop.permute.xlu0 %725
    %v744 = vunpack.c.l.b16 %v648
    %v745 = vunpack.c.l.b16 %v649
    %v746 = vunpack.c.l.b16 %v650
    %v747 = vunpack.c.l.b16 %v651
    %v748 = vunpack.c.l.b16 %v652
    %v749 = vunpack.c.l.b16 %v653
    %v750 = vunpack.c.l.b16 %v654
    %v751 = vunpack.c.l.b16 %v655
    %v752 = vunpack.c.l.b16 %v656
    %v753 = vunpack.c.l.b16 %v657
    %v754 = vunpack.c.l.b16 %v658
    %v755 = vunpack.c.l.b16 %v659
    %v756 = vunpack.c.l.b16 %v660
    %v757 = vunpack.c.l.b16 %v661
    %v758 = vunpack.c.l.b16 %v662
    %v759 = vunpack.c.l.b16 %v663
    %v760 = vpack.c.b16 %v745, %v744
    %v761 = vpack.c.b16 %v747, %v746
    %v762 = vpack.c.b16 %v749, %v748
    %v763 = vpack.c.b16 %v751, %v750
    %v764 = vpack.c.b16 %v753, %v752
    %v765 = vpack.c.b16 %v755, %v754
    %v766 = vpack.c.b16 %v757, %v756
    %v767 = vpack.c.b16 %v759, %v758
    %776 = vmatprep.subr.bf16.mxu0 0
    %777 = vmatpush1.bf16.msra.mxu0 %v760
    %778 = vmatprep.subr.bf16.mxu0 0
    %779 = vmatpush1.bf16.msra.mxu0 %v761
    %780 = vmatprep.subr.bf16.mxu0 0
    %781 = vmatpush1.bf16.msra.mxu0 %v762
    %782 = vmatprep.subr.bf16.mxu0 0
    %783 = vmatpush1.bf16.msra.mxu0 %v763
    %784 = vmatprep.subr.bf16.mxu0 0
    %785 = vmatpush1.bf16.msra.mxu0 %v764
    %786 = vmatprep.subr.bf16.mxu0 0
    %787 = vmatpush1.bf16.msra.mxu0 %v765
    %788 = vmatprep.subr.bf16.mxu0 0
    %789 = vmatpush1.bf16.msra.mxu0 %v766
    %790 = vmatprep.subr.bf16.mxu0 0
    %791 = vmatpush1.bf16.msra.mxu0 %v767
    %792 = vmatprep.subr.bf16.mxu0 0
    %793 = vmatpush1.bf16.msra.mxu0 0
    %794 = vmatprep.subr.bf16.mxu0 0
    %795 = vmatpush1.bf16.msra.mxu0 0
    %796 = vmatprep.subr.bf16.mxu0 0
    %797 = vmatpush1.bf16.msra.mxu0 0
    %798 = vmatprep.subr.bf16.mxu0 0
    %799 = vmatpush1.bf16.msra.mxu0 0
    %800 = vmatprep.subr.bf16.mxu0 0
    %801 = vmatpush1.bf16.msra.mxu0 0
    %802 = vmatprep.subr.bf16.mxu0 0
    %803 = vmatpush1.bf16.msra.mxu0 0
    %804 = vmatprep.subr.bf16.mxu0 0
    %805 = vmatpush1.bf16.msra.mxu0 0
    %806 = vmatprep.subr.bf16.mxu0 0
    %807 = vmatpush1.bf16.msra.mxu0 0
    %808 = vmatprep.mubr.bf16.mxu0 0
    %809 = vmatmul.mubr.bf16.gmra.mrb[0].mxu0 %v400
    %v810 = vpop.f32.mrb[0].mxu0
    %v811 = vadd.f32 %v666, %v810
    %v812 = vpop.f32.mrb[0].mxu0
    %v813 = vpop.f32.mrb[0].mxu0
    %v814 = vadd.f32 %v670, %v813
    %v815 = vpop.f32.mrb[0].mxu0
    %816 = vmatprep.mubr.bf16.mxu0 0
    %817 = vmatmul.mubr.bf16.gmra.mrb[0].mxu0 %v401
    %v818 = vpop.f32.mrb[0].mxu0
    %v819 = vadd.f32 %v674, %v818
    %v820 = vpop.f32.mrb[0].mxu0
    %v821 = vpop.f32.mrb[0].mxu0
    %v822 = vadd.f32 %v678, %v821
    %v823 = vpop.f32.mrb[0].mxu0
    %824 = vmatprep.mubr.bf16.mxu0 0
    %825 = vmatmul.mubr.bf16.gmra.mrb[0].mxu0 %v402
    %v826 = vpop.f32.mrb[0].mxu0
    %v827 = vadd.f32 %v682, %v826
    %v828 = vpop.f32.mrb[0].mxu0
    %v829 = vpop.f32.mrb[0].mxu0
    %v830 = vadd.f32 %v686, %v829
    %v831 = vpop.f32.mrb[0].mxu0
    %832 = vmatprep.mubr.bf16.mxu0 0
    %833 = vmatmul.mubr.bf16.gmra.mrb[0].mxu0 %v403
    %v834 = vpop.f32.mrb[0].mxu0
    %v835 = vadd.f32 %v690, %v834
    %v836 = vpop.f32.mrb[0].mxu0
    %v837 = vpop.f32.mrb[0].mxu0
    %v838 = vadd.f32 %v694, %v837
    %v839 = vpop.f32.mrb[0].mxu0
    %840 = vmatprep.mubr.bf16.mxu0 0
    %841 = vmatmul.mubr.bf16.gmra.mrb[0].mxu0 %v404
    %v842 = vpop.f32.mrb[0].mxu0
    %v843 = vadd.f32 %v698, %v842
    %v844 = vpop.f32.mrb[0].mxu0
    %v845 = vpop.f32.mrb[0].mxu0
    %v846 = vadd.f32 %v702, %v845
    %v847 = vpop.f32.mrb[0].mxu0
    %848 = vmatprep.mubr.bf16.mxu0 0
    %849 = vmatmul.mubr.bf16.gmra.mrb[0].mxu0 %v405
    %v850 = vpop.f32.mrb[0].mxu0
    %v851 = vadd.f32 %v706, %v850
    %v852 = vpop.f32.mrb[0].mxu0
    %v853 = vpop.f32.mrb[0].mxu0
    %v854 = vadd.f32 %v710, %v853
    %v855 = vpop.f32.mrb[0].mxu0
    %856 = vmatprep.mubr.bf16.mxu0 0
    %857 = vmatmul.mubr.bf16.gmra.mrb[0].mxu0 %v406
    %v858 = vpop.f32.mrb[0].mxu0
    %v859 = vadd.f32 %v714, %v858
    %v860 = vpop.f32.mrb[0].mxu0
    %v861 = vpop.f32.mrb[0].mxu0
    %v862 = vadd.f32 %v718, %v861
    %v863 = vpop.f32.mrb[0].mxu0
    %864 = vmatprep.mubr.bf16.mxu0 0
    %865 = vmatmul.mubr.bf16.gmra.mrb[0].mxu0 %v407
    %v866 = vpop.f32.mrb[0].mxu0
    %v867 = vadd.f32 %v722, %v866
    %v868 = vpop.f32.mrb[0].mxu0
    %v869 = vpop.f32.mrb[0].mxu0
    %v870 = vadd.f32 %v726, %v869
    %v871 = vpop.f32.mrb[0].mxu0
    %872 = vdwg.mxu0
    %v873 = vtanh.pop %v811
    %v874 = vtanh.pop %v814
    %v875 = vtanh.pop %v819
    %v876 = vtanh.pop %v822
    %v877 = vtanh.pop %v827
    %v878 = vtanh.pop %v830
    %v879 = vtanh.pop %v835
    %v880 = vtanh.pop %v838
    %v881 = vtanh.pop %v843
    %v882 = vtanh.pop %v846
    %v883 = vtanh.pop %v851
    %v884 = vtanh.pop %v854
    %v885 = vtanh.pop %v859
    %v886 = vtanh.pop %v862
    %v887 = vtanh.pop %v867
    %v888 = vtanh.pop %v870
    %889 = vmatprep.subr.mxu0 0.0
    %890 = vmatpush1.msra.mxu0 %v873
    %891 = vmatprep.subr.mxu0 0.0
    %892 = vmatpush1.msra.mxu0 %v874
    %893 = vmatprep.subr.mxu0 0.0
    %894 = vmatpush1.msra.mxu0 %v875
    %895 = vmatprep.subr.mxu0 0.0
    %896 = vmatpush1.msra.mxu0 %v876
    %897 = vmatprep.subr.mxu0 0.0
    %898 = vmatpush1.msra.mxu0 %v877
    %899 = vmatprep.subr.mxu0 0.0
    %900 = vmatpush1.msra.mxu0 %v878
    %901 = vmatprep.subr.mxu0 0.0
    %902 = vmatpush1.msra.mxu0 %v879
    %903 = vmatprep.subr.mxu0 0.0
    %904 = vmatpush1.msra.mxu0 %v880
    %905 = vmatprep.subr.mxu0 0.0
    %906 = vmatpush1.msra.mxu0 %v881
    %907 = vmatprep.subr.mxu0 0.0
    %908 = vmatpush1.msra.mxu0 %v882
    %909 = vmatprep.subr.mxu0 0.0
    %910 = vmatpush1.msra.mxu0 %v883
    %911 = vmatprep.subr.mxu0 0.0
    %912 = vmatpush1.msra.mxu0 %v884
    %913 = vmatprep.subr.mxu0 0.0
    %914 = vmatpush1.msra.mxu0 %v885
    %915 = vmatprep.subr.mxu0 0.0
    %916 = vmatpush1.msra.mxu0 %v886
    %917 = vmatprep.subr.mxu0 0.0
    %918 = vmatpush1.msra.mxu0 %v887
    %919 = vmatprep.subr.mxu0 0.0
    %920 = vmatpush1.msra.mxu0 %v888
    %921 = vmatprep.subr.mxu0 0.0
    %922 = vmatpush1.msra.mxu0 0.0
    %923 = vmatprep.subr.mxu0 0.0
    %924 = vmatpush1.msra.mxu0 0.0
    %925 = vmatprep.subr.mxu0 0.0
    %926 = vmatpush1.msra.mxu0 0.0
    %927 = vmatprep.subr.mxu0 0.0
    %928 = vmatpush1.msra.mxu0 0.0
    %929 = vmatprep.subr.mxu0 0.0
    %930 = vmatpush1.msra.mxu0 0.0
    %931 = vmatprep.subr.mxu0 0.0
    %932 = vmatpush1.msra.mxu0 0.0
    %933 = vmatprep.subr.mxu0 0.0
    %934 = vmatpush1.msra.mxu0 0.0
    %935 = vmatprep.subr.mxu0 0.0
    %936 = vmatpush1.msra.mxu0 0.0
    %937 = vmatprep.subr.mxu0 0.0
    %938 = vmatpush1.msra.mxu0 0.0
    %939 = vmatprep.subr.mxu0 0.0
    %940 = vmatpush1.msra.mxu0 0.0
    %941 = vmatprep.subr.mxu0 0.0
    %942 = vmatpush1.msra.mxu0 0.0
    %943 = vmatprep.subr.mxu0 0.0
    %944 = vmatpush1.msra.mxu0 0.0
    %945 = vmatprep.subr.mxu0 0.0
    %946 = vmatpush1.msra.mxu0 0.0
    %947 = vmatprep.subr.mxu0 0.0
    %948 = vmatpush1.msra.mxu0 0.0
    %949 = vmatprep.subr.mxu0 0.0
    %950 = vmatpush1.msra.mxu0 0.0
    %951 = vmatprep.subr.mxu0 0.0
    %952 = vmatpush1.msra.mxu0 0.0
    %953 = vmatprep.mubr.f32.mxu0 0.0
    %954 = vmatmul.mubr.f32.gmra.mrb[0].mxu0 %v271
    %v955 = vpop.f32.mrb[0].mxu0
    %v956 = vadd.f32 0.0, %v955
    %v957 = vpop.f32.mrb[0].mxu0
    %958 = vdwg.mxu0
    %s959 = scalar_lea.vmem [#allocation3], 128
    %v960 = vld [vmem:[%s959] sm:$0xf]
    %v961 = vld [vmem:[%s959 + $0x4] sm:$0xf]
    %v962 = vld [vmem:[%s959 + $0x8] sm:$0xf]
    %v963 = vld [vmem:[%s959 + $0xc] sm:$0xf]
    %v964 = vld [vmem:[%s959 + $0x10] sm:$0xf]
    %v965 = vld [vmem:[%s959 + $0x14] sm:$0xf]
    %v966 = vld [vmem:[%s959 + $0x18] sm:$0xf]
    %v967 = vld [vmem:[%s959 + $0x1c] sm:$0xf]
    %v968 = vld [vmem:[%s959 + $0x20] sm:$0xf]
    %v969 = vld [vmem:[%s959 + $0x24] sm:$0xf]
    %v970 = vld [vmem:[%s959 + $0x28] sm:$0xf]
    %v971 = vld [vmem:[%s959 + $0x2c] sm:$0xf]
    %v972 = vld [vmem:[%s959 + $0x30] sm:$0xf]
    %v973 = vld [vmem:[%s959 + $0x34] sm:$0xf]
    %v974 = vld [vmem:[%s959 + $0x38] sm:$0xf]
    %v975 = vld [vmem:[%s959 + $0x3c] sm:$0xf]
    %976 = vset.pattern.permute.xlu0 2
    %977 = vperm.xlu0 %976, %v239
    %v978 = vpop.permute.xlu0 %977
    %980 = vset.pattern.permute.xlu0 2
    %981 = vperm.xlu0 %980, %v240
    %v982 = vpop.permute.xlu0 %981
    %984 = vset.pattern.permute.xlu0 2
    %985 = vperm.xlu0 %984, %v241
    %v986 = vpop.permute.xlu0 %985
    %988 = vset.pattern.permute.xlu0 2
    %989 = vperm.xlu0 %988, %v242
    %v990 = vpop.permute.xlu0 %989
    %992 = vset.pattern.permute.xlu0 2
    %993 = vperm.xlu0 %992, %v243
    %v994 = vpop.permute.xlu0 %993
    %996 = vset.pattern.permute.xlu0 2
    %997 = vperm.xlu0 %996, %v244
    %v998 = vpop.permute.xlu0 %997
    %1000 = vset.pattern.permute.xlu0 2
    %1001 = vperm.xlu0 %1000, %v245
    %v1002 = vpop.permute.xlu0 %1001
    %1004 = vset.pattern.permute.xlu0 2
    %1005 = vperm.xlu0 %1004, %v246
    %v1006 = vpop.permute.xlu0 %1005
    %1008 = vset.pattern.permute.xlu0 2
    %1009 = vperm.xlu0 %1008, %v247
    %v1010 = vpop.permute.xlu0 %1009
    %1012 = vset.pattern.permute.xlu0 2
    %1013 = vperm.xlu0 %1012, %v248
    %v1014 = vpop.permute.xlu0 %1013
    %1016 = vset.pattern.permute.xlu0 2
    %1017 = vperm.xlu0 %1016, %v249
    %v1018 = vpop.permute.xlu0 %1017
    %1020 = vset.pattern.permute.xlu0 2
    %1021 = vperm.xlu0 %1020, %v250
    %v1022 = vpop.permute.xlu0 %1021
    %1024 = vset.pattern.permute.xlu0 2
    %1025 = vperm.xlu0 %1024, %v251
    %v1026 = vpop.permute.xlu0 %1025
    %1028 = vset.pattern.permute.xlu0 2
    %1029 = vperm.xlu0 %1028, %v252
    %v1030 = vpop.permute.xlu0 %1029
    %1032 = vset.pattern.permute.xlu0 2
    %1033 = vperm.xlu0 %1032, %v253
    %v1034 = vpop.permute.xlu0 %1033
    %1036 = vset.pattern.permute.xlu0 2
    %1037 = vperm.xlu0 %1036, %v254
    %v1038 = vpop.permute.xlu0 %1037
    %v1056 = vunpack.c.l.b16 %v960
    %v1057 = vunpack.c.l.b16 %v961
    %v1058 = vunpack.c.l.b16 %v962
    %v1059 = vunpack.c.l.b16 %v963
    %v1060 = vunpack.c.l.b16 %v964
    %v1061 = vunpack.c.l.b16 %v965
    %v1062 = vunpack.c.l.b16 %v966
    %v1063 = vunpack.c.l.b16 %v967
    %v1064 = vunpack.c.l.b16 %v968
    %v1065 = vunpack.c.l.b16 %v969
    %v1066 = vunpack.c.l.b16 %v970
    %v1067 = vunpack.c.l.b16 %v971
    %v1068 = vunpack.c.l.b16 %v972
    %v1069 = vunpack.c.l.b16 %v973
    %v1070 = vunpack.c.l.b16 %v974
    %v1071 = vunpack.c.l.b16 %v975
    %v1072 = vpack.c.b16 %v1057, %v1056
    %v1073 = vpack.c.b16 %v1059, %v1058
    %v1074 = vpack.c.b16 %v1061, %v1060
    %v1075 = vpack.c.b16 %v1063, %v1062
    %v1076 = vpack.c.b16 %v1065, %v1064
    %v1077 = vpack.c.b16 %v1067, %v1066
    %v1078 = vpack.c.b16 %v1069, %v1068
    %v1079 = vpack.c.b16 %v1071, %v1070
    %1088 = vmatprep.subr.bf16.mxu0 0
    %1089 = vmatpush1.bf16.msra.mxu0 %v1072
    %1090 = vmatprep.subr.bf16.mxu0 0
    %1091 = vmatpush1.bf16.msra.mxu0 %v1073
    %1092 = vmatprep.subr.bf16.mxu0 0
    %1093 = vmatpush1.bf16.msra.mxu0 %v1074
    %1094 = vmatprep.subr.bf16.mxu0 0
    %1095 = vmatpush1.bf16.msra.mxu0 %v1075
    %1096 = vmatprep.subr.bf16.mxu0 0
    %1097 = vmatpush1.bf16.msra.mxu0 %v1076
    %1098 = vmatprep.subr.bf16.mxu0 0
    %1099 = vmatpush1.bf16.msra.mxu0 %v1077
    %1100 = vmatprep.subr.bf16.mxu0 0
    %1101 = vmatpush1.bf16.msra.mxu0 %v1078
    %1102 = vmatprep.subr.bf16.mxu0 0
    %1103 = vmatpush1.bf16.msra.mxu0 %v1079
    %1104 = vmatprep.subr.bf16.mxu0 0
    %1105 = vmatpush1.bf16.msra.mxu0 0
    %1106 = vmatprep.subr.bf16.mxu0 0
    %1107 = vmatpush1.bf16.msra.mxu0 0
    %1108 = vmatprep.subr.bf16.mxu0 0
    %1109 = vmatpush1.bf16.msra.mxu0 0
    %1110 = vmatprep.subr.bf16.mxu0 0
    %1111 = vmatpush1.bf16.msra.mxu0 0
    %1112 = vmatprep.subr.bf16.mxu0 0
    %1113 = vmatpush1.bf16.msra.mxu0 0
    %1114 = vmatprep.subr.bf16.mxu0 0
    %1115 = vmatpush1.bf16.msra.mxu0 0
    %1116 = vmatprep.subr.bf16.mxu0 0
    %1117 = vmatpush1.bf16.msra.mxu0 0
    %1118 = vmatprep.subr.bf16.mxu0 0
    %1119 = vmatpush1.bf16.msra.mxu0 0
    %1120 = vmatprep.mubr.bf16.mxu0 0
    %1121 = vmatmul.mubr.bf16.gmra.mrb[0].mxu0 %v400
    %v1122 = vpop.f32.mrb[0].mxu0
    %v1123 = vadd.f32 %v978, %v1122
    %v1124 = vpop.f32.mrb[0].mxu0
    %v1125 = vpop.f32.mrb[0].mxu0
    %v1126 = vadd.f32 %v982, %v1125
    %v1127 = vpop.f32.mrb[0].mxu0
    %1128 = vmatprep.mubr.bf16.mxu0 0
    %1129 = vmatmul.mubr.bf16.gmra.mrb[0].mxu0 %v401
    %v1130 = vpop.f32.mrb[0].mxu0
    %v1131 = vadd.f32 %v986, %v1130
    %v1132 = vpop.f32.mrb[0].mxu0
    %v1133 = vpop.f32.mrb[0].mxu0
    %v1134 = vadd.f32 %v990, %v1133
    %v1135 = vpop.f32.mrb[0].mxu0
    %1136 = vmatprep.mubr.bf16.mxu0 0
    %1137 = vmatmul.mubr.bf16.gmra.mrb[0].mxu0 %v402
    %v1138 = vpop.f32.mrb[0].mxu0
    %v1139 = vadd.f32 %v994, %v1138
    %v1140 = vpop.f32.mrb[0].mxu0
    %v1141 = vpop.f32.mrb[0].mxu0
    %v1142 = vadd.f32 %v998, %v1141
    %v1143 = vpop.f32.mrb[0].mxu0
    %1144 = vmatprep.mubr.bf16.mxu0 0
    %1145 = vmatmul.mubr.bf16.gmra.mrb[0].mxu0 %v403
    %v1146 = vpop.f32.mrb[0].mxu0
    %v1147 = vadd.f32 %v1002, %v1146
    %v1148 = vpop.f32.mrb[0].mxu0
    %v1149 = vpop.f32.mrb[0].mxu0
    %v1150 = vadd.f32 %v1006, %v1149
    %v1151 = vpop.f32.mrb[0].mxu0
    %1152 = vmatprep.mubr.bf16.mxu0 0
    %1153 = vmatmul.mubr.bf16.gmra.mrb[0].mxu0 %v404
    %v1154 = vpop.f32.mrb[0].mxu0
    %v1155 = vadd.f32 %v1010, %v1154
    %v1156 = vpop.f32.mrb[0].mxu0
    %v1157 = vpop.f32.mrb[0].mxu0
    %v1158 = vadd.f32 %v1014, %v1157
    %v1159 = vpop.f32.mrb[0].mxu0
    %1160 = vmatprep.mubr.bf16.mxu0 0
    %1161 = vmatmul.mubr.bf16.gmra.mrb[0].mxu0 %v405
    %v1162 = vpop.f32.mrb[0].mxu0
    %v1163 = vadd.f32 %v1018, %v1162
    %v1164 = vpop.f32.mrb[0].mxu0
    %v1165 = vpop.f32.mrb[0].mxu0
    %v1166 = vadd.f32 %v1022, %v1165
    %v1167 = vpop.f32.mrb[0].mxu0
    %1168 = vmatprep.mubr.bf16.mxu0 0
    %1169 = vmatmul.mubr.bf16.gmra.mrb[0].mxu0 %v406
    %v1170 = vpop.f32.mrb[0].mxu0
    %v1171 = vadd.f32 %v1026, %v1170
    %v1172 = vpop.f32.mrb[0].mxu0
    %v1173 = vpop.f32.mrb[0].mxu0
    %v1174 = vadd.f32 %v1030, %v1173
    %v1175 = vpop.f32.mrb[0].mxu0
    %1176 = vmatprep.mubr.bf16.mxu0 0
    %1177 = vmatmul.mubr.bf16.gmra.mrb[0].mxu0 %v407
    %v1178 = vpop.f32.mrb[0].mxu0
    %v1179 = vadd.f32 %v1034, %v1178
    %v1180 = vpop.f32.mrb[0].mxu0
    %v1181 = vpop.f32.mrb[0].mxu0
    %v1182 = vadd.f32 %v1038, %v1181
    %v1183 = vpop.f32.mrb[0].mxu0
    %1184 = vdwg.mxu0
    %v1185 = vtanh.pop %v1123
    %v1186 = vtanh.pop %v1126
    %v1187 = vtanh.pop %v1131
    %v1188 = vtanh.pop %v1134
    %v1189 = vtanh.pop %v1139
    %v1190 = vtanh.pop %v1142
    %v1191 = vtanh.pop %v1147
    %v1192 = vtanh.pop %v1150
    %v1193 = vtanh.pop %v1155
    %v1194 = vtanh.pop %v1158
    %v1195 = vtanh.pop %v1163
    %v1196 = vtanh.pop %v1166
    %v1197 = vtanh.pop %v1171
    %v1198 = vtanh.pop %v1174
    %v1199 = vtanh.pop %v1179
    %v1200 = vtanh.pop %v1182
    %1201 = vmatprep.subr.mxu0 0.0
    %1202 = vmatpush1.msra.mxu0 %v1185
    %1203 = vmatprep.subr.mxu0 0.0
    %1204 = vmatpush1.msra.mxu0 %v1186
    %1205 = vmatprep.subr.mxu0 0.0
    %1206 = vmatpush1.msra.mxu0 %v1187
    %1207 = vmatprep.subr.mxu0 0.0
    %1208 = vmatpush1.msra.mxu0 %v1188
    %1209 = vmatprep.subr.mxu0 0.0
    %1210 = vmatpush1.msra.mxu0 %v1189
    %1211 = vmatprep.subr.mxu0 0.0
    %1212 = vmatpush1.msra.mxu0 %v1190
    %1213 = vmatprep.subr.mxu0 0.0
    %1214 = vmatpush1.msra.mxu0 %v1191
    %1215 = vmatprep.subr.mxu0 0.0
    %1216 = vmatpush1.msra.mxu0 %v1192
    %1217 = vmatprep.subr.mxu0 0.0
    %1218 = vmatpush1.msra.mxu0 %v1193
    %1219 = vmatprep.subr.mxu0 0.0
    %1220 = vmatpush1.msra.mxu0 %v1194
    %1221 = vmatprep.subr.mxu0 0.0
    %1222 = vmatpush1.msra.mxu0 %v1195
    %1223 = vmatprep.subr.mxu0 0.0
    %1224 = vmatpush1.msra.mxu0 %v1196
    %1225 = vmatprep.subr.mxu0 0.0
    %1226 = vmatpush1.msra.mxu0 %v1197
    %1227 = vmatprep.subr.mxu0 0.0
    %1228 = vmatpush1.msra.mxu0 %v1198
    %1229 = vmatprep.subr.mxu0 0.0
    %1230 = vmatpush1.msra.mxu0 %v1199
    %1231 = vmatprep.subr.mxu0 0.0
    %1232 = vmatpush1.msra.mxu0 %v1200
    %1233 = vmatprep.subr.mxu0 0.0
    %1234 = vmatpush1.msra.mxu0 0.0
    %1235 = vmatprep.subr.mxu0 0.0
    %1236 = vmatpush1.msra.mxu0 0.0
    %1237 = vmatprep.subr.mxu0 0.0
    %1238 = vmatpush1.msra.mxu0 0.0
    %1239 = vmatprep.subr.mxu0 0.0
    %1240 = vmatpush1.msra.mxu0 0.0
    %1241 = vmatprep.subr.mxu0 0.0
    %1242 = vmatpush1.msra.mxu0 0.0
    %1243 = vmatprep.subr.mxu0 0.0
    %1244 = vmatpush1.msra.mxu0 0.0
    %1245 = vmatprep.subr.mxu0 0.0
    %1246 = vmatpush1.msra.mxu0 0.0
    %1247 = vmatprep.subr.mxu0 0.0
    %1248 = vmatpush1.msra.mxu0 0.0
    %1249 = vmatprep.subr.mxu0 0.0
    %1250 = vmatpush1.msra.mxu0 0.0
    %1251 = vmatprep.subr.mxu0 0.0
    %1252 = vmatpush1.msra.mxu0 0.0
    %1253 = vmatprep.subr.mxu0 0.0
    %1254 = vmatpush1.msra.mxu0 0.0
    %1255 = vmatprep.subr.mxu0 0.0
    %1256 = vmatpush1.msra.mxu0 0.0
    %1257 = vmatprep.subr.mxu0 0.0
    %1258 = vmatpush1.msra.mxu0 0.0
    %1259 = vmatprep.subr.mxu0 0.0
    %1260 = vmatpush1.msra.mxu0 0.0
    %1261 = vmatprep.subr.mxu0 0.0
    %1262 = vmatpush1.msra.mxu0 0.0
    %1263 = vmatprep.subr.mxu0 0.0
    %1264 = vmatpush1.msra.mxu0 0.0
    %1265 = vmatprep.mubr.f32.mxu0 0.0
    %1266 = vmatmul.mubr.f32.gmra.mrb[0].mxu0 %v271
    %v1267 = vpop.f32.mrb[0].mxu0
    %v1268 = vadd.f32 0.0, %v1267
    %v1269 = vpop.f32.mrb[0].mxu0
    %1270 = vdwg.mxu0
    %s1271 = scalar_lea.vmem [#allocation3], 192
    %v1272 = vld [vmem:[%s1271] sm:$0xf]
    %v1273 = vld [vmem:[%s1271 + $0x4] sm:$0xf]
    %v1274 = vld [vmem:[%s1271 + $0x8] sm:$0xf]
    %v1275 = vld [vmem:[%s1271 + $0xc] sm:$0xf]
    %v1276 = vld [vmem:[%s1271 + $0x10] sm:$0xf]
    %v1277 = vld [vmem:[%s1271 + $0x14] sm:$0xf]
    %v1278 = vld [vmem:[%s1271 + $0x18] sm:$0xf]
    %v1279 = vld [vmem:[%s1271 + $0x1c] sm:$0xf]
    %v1280 = vld [vmem:[%s1271 + $0x20] sm:$0xf]
    %v1281 = vld [vmem:[%s1271 + $0x24] sm:$0xf]
    %v1282 = vld [vmem:[%s1271 + $0x28] sm:$0xf]
    %v1283 = vld [vmem:[%s1271 + $0x2c] sm:$0xf]
    %v1284 = vld [vmem:[%s1271 + $0x30] sm:$0xf]
    %v1285 = vld [vmem:[%s1271 + $0x34] sm:$0xf]
    %v1286 = vld [vmem:[%s1271 + $0x38] sm:$0xf]
    %v1287 = vld [vmem:[%s1271 + $0x3c] sm:$0xf]
    %1288 = vset.pattern.permute.xlu0 3
    %1289 = vperm.xlu0 %1288, %v239
    %v1290 = vpop.permute.xlu0 %1289
    %1292 = vset.pattern.permute.xlu0 3
    %1293 = vperm.xlu0 %1292, %v240
    %v1294 = vpop.permute.xlu0 %1293
    %1296 = vset.pattern.permute.xlu0 3
    %1297 = vperm.xlu0 %1296, %v241
    %v1298 = vpop.permute.xlu0 %1297
    %1300 = vset.pattern.permute.xlu0 3
    %1301 = vperm.xlu0 %1300, %v242
    %v1302 = vpop.permute.xlu0 %1301
    %1304 = vset.pattern.permute.xlu0 3
    %1305 = vperm.xlu0 %1304, %v243
    %v1306 = vpop.permute.xlu0 %1305
    %1308 = vset.pattern.permute.xlu0 3
    %1309 = vperm.xlu0 %1308, %v244
    %v1310 = vpop.permute.xlu0 %1309
    %1312 = vset.pattern.permute.xlu0 3
    %1313 = vperm.xlu0 %1312, %v245
    %v1314 = vpop.permute.xlu0 %1313
    %1316 = vset.pattern.permute.xlu0 3
    %1317 = vperm.xlu0 %1316, %v246
    %v1318 = vpop.permute.xlu0 %1317
    %1320 = vset.pattern.permute.xlu0 3
    %1321 = vperm.xlu0 %1320, %v247
    %v1322 = vpop.permute.xlu0 %1321
    %1324 = vset.pattern.permute.xlu0 3
    %1325 = vperm.xlu0 %1324, %v248
    %v1326 = vpop.permute.xlu0 %1325
    %1328 = vset.pattern.permute.xlu0 3
    %1329 = vperm.xlu0 %1328, %v249
    %v1330 = vpop.permute.xlu0 %1329
    %1332 = vset.pattern.permute.xlu0 3
    %1333 = vperm.xlu0 %1332, %v250
    %v1334 = vpop.permute.xlu0 %1333
    %1336 = vset.pattern.permute.xlu0 3
    %1337 = vperm.xlu0 %1336, %v251
    %v1338 = vpop.permute.xlu0 %1337
    %1340 = vset.pattern.permute.xlu0 3
    %1341 = vperm.xlu0 %1340, %v252
    %v1342 = vpop.permute.xlu0 %1341
    %1344 = vset.pattern.permute.xlu0 3
    %1345 = vperm.xlu0 %1344, %v253
    %v1346 = vpop.permute.xlu0 %1345
    %1348 = vset.pattern.permute.xlu0 3
    %1349 = vperm.xlu0 %1348, %v254
    %v1350 = vpop.permute.xlu0 %1349
    %v1368 = vunpack.c.l.b16 %v1272
    %v1369 = vunpack.c.l.b16 %v1273
    %v1370 = vunpack.c.l.b16 %v1274
    %v1371 = vunpack.c.l.b16 %v1275
    %v1372 = vunpack.c.l.b16 %v1276
    %v1373 = vunpack.c.l.b16 %v1277
    %v1374 = vunpack.c.l.b16 %v1278
    %v1375 = vunpack.c.l.b16 %v1279
    %v1376 = vunpack.c.l.b16 %v1280
    %v1377 = vunpack.c.l.b16 %v1281
    %v1378 = vunpack.c.l.b16 %v1282
    %v1379 = vunpack.c.l.b16 %v1283
    %v1380 = vunpack.c.l.b16 %v1284
    %v1381 = vunpack.c.l.b16 %v1285
    %v1382 = vunpack.c.l.b16 %v1286
    %v1383 = vunpack.c.l.b16 %v1287
    %v1384 = vpack.c.b16 %v1369, %v1368
    %v1385 = vpack.c.b16 %v1371, %v1370
    %v1386 = vpack.c.b16 %v1373, %v1372
    %v1387 = vpack.c.b16 %v1375, %v1374
    %v1388 = vpack.c.b16 %v1377, %v1376
    %v1389 = vpack.c.b16 %v1379, %v1378
    %v1390 = vpack.c.b16 %v1381, %v1380
    %v1391 = vpack.c.b16 %v1383, %v1382
    %1400 = vmatprep.subr.bf16.mxu0 0
    %1401 = vmatpush1.bf16.msra.mxu0 %v1384
    %1402 = vmatprep.subr.bf16.mxu0 0
    %1403 = vmatpush1.bf16.msra.mxu0 %v1385
    %1404 = vmatprep.subr.bf16.mxu0 0
    %1405 = vmatpush1.bf16.msra.mxu0 %v1386
    %1406 = vmatprep.subr.bf16.mxu0 0
    %1407 = vmatpush1.bf16.msra.mxu0 %v1387
    %1408 = vmatprep.subr.bf16.mxu0 0
    %1409 = vmatpush1.bf16.msra.mxu0 %v1388
    %1410 = vmatprep.subr.bf16.mxu0 0
    %1411 = vmatpush1.bf16.msra.mxu0 %v1389
    %1412 = vmatprep.subr.bf16.mxu0 0
    %1413 = vmatpush1.bf16.msra.mxu0 %v1390
    %1414 = vmatprep.subr.bf16.mxu0 0
    %1415 = vmatpush1.bf16.msra.mxu0 %v1391
    %1416 = vmatprep.subr.bf16.mxu0 0
    %1417 = vmatpush1.bf16.msra.mxu0 0
    %1418 = vmatprep.subr.bf16.mxu0 0
    %1419 = vmatpush1.bf16.msra.mxu0 0
    %1420 = vmatprep.subr.bf16.mxu0 0
    %1421 = vmatpush1.bf16.msra.mxu0 0
    %1422 = vmatprep.subr.bf16.mxu0 0
    %1423 = vmatpush1.bf16.msra.mxu0 0
    %1424 = vmatprep.subr.bf16.mxu0 0
    %1425 = vmatpush1.bf16.msra.mxu0 0
    %1426 = vmatprep.subr.bf16.mxu0 0
    %1427 = vmatpush1.bf16.msra.mxu0 0
    %1428 = vmatprep.subr.bf16.mxu0 0
    %1429 = vmatpush1.bf16.msra.mxu0 0
    %1430 = vmatprep.subr.bf16.mxu0 0
    %1431 = vmatpush1.bf16.msra.mxu0 0
    %1432 = vmatprep.mubr.bf16.mxu0 0
    %1433 = vmatmul.mubr.bf16.gmra.mrb[0].mxu0 %v400
    %v1434 = vpop.f32.mrb[0].mxu0
    %v1435 = vadd.f32 %v1290, %v1434
    %v1436 = vpop.f32.mrb[0].mxu0
    %v1437 = vpop.f32.mrb[0].mxu0
    %v1438 = vadd.f32 %v1294, %v1437
    %v1439 = vpop.f32.mrb[0].mxu0
    %1440 = vmatprep.mubr.bf16.mxu0 0
    %1441 = vmatmul.mubr.bf16.gmra.mrb[0].mxu0 %v401
    %v1442 = vpop.f32.mrb[0].mxu0
    %v1443 = vadd.f32 %v1298, %v1442
    %v1444 = vpop.f32.mrb[0].mxu0
    %v1445 = vpop.f32.mrb[0].mxu0
    %v1446 = vadd.f32 %v1302, %v1445
    %v1447 = vpop.f32.mrb[0].mxu0
    %1448 = vmatprep.mubr.bf16.mxu0 0
    %1449 = vmatmul.mubr.bf16.gmra.mrb[0].mxu0 %v402
    %v1450 = vpop.f32.mrb[0].mxu0
    %v1451 = vadd.f32 %v1306, %v1450
    %v1452 = vpop.f32.mrb[0].mxu0
    %v1453 = vpop.f32.mrb[0].mxu0
    %v1454 = vadd.f32 %v1310, %v1453
    %v1455 = vpop.f32.mrb[0].mxu0
    %1456 = vmatprep.mubr.bf16.mxu0 0
    %1457 = vmatmul.mubr.bf16.gmra.mrb[0].mxu0 %v403
    %v1458 = vpop.f32.mrb[0].mxu0
    %v1459 = vadd.f32 %v1314, %v1458
    %v1460 = vpop.f32.mrb[0].mxu0
    %v1461 = vpop.f32.mrb[0].mxu0
    %v1462 = vadd.f32 %v1318, %v1461
    %v1463 = vpop.f32.mrb[0].mxu0
    %1464 = vmatprep.mubr.bf16.mxu0 0
    %1465 = vmatmul.mubr.bf16.gmra.mrb[0].mxu0 %v404
    %v1466 = vpop.f32.mrb[0].mxu0
    %v1467 = vadd.f32 %v1322, %v1466
    %v1468 = vpop.f32.mrb[0].mxu0
    %v1469 = vpop.f32.mrb[0].mxu0
    %v1470 = vadd.f32 %v1326, %v1469
    %v1471 = vpop.f32.mrb[0].mxu0
    %1472 = vmatprep.mubr.bf16.mxu0 0
    %1473 = vmatmul.mubr.bf16.gmra.mrb[0].mxu0 %v405
    %v1474 = vpop.f32.mrb[0].mxu0
    %v1475 = vadd.f32 %v1330, %v1474
    %v1476 = vpop.f32.mrb[0].mxu0
    %v1477 = vpop.f32.mrb[0].mxu0
    %v1478 = vadd.f32 %v1334, %v1477
    %v1479 = vpop.f32.mrb[0].mxu0
    %1480 = vmatprep.mubr.bf16.mxu0 0
    %1481 = vmatmul.mubr.bf16.gmra.mrb[0].mxu0 %v406
    %v1482 = vpop.f32.mrb[0].mxu0
    %v1483 = vadd.f32 %v1338, %v1482
    %v1484 = vpop.f32.mrb[0].mxu0
    %v1485 = vpop.f32.mrb[0].mxu0
    %v1486 = vadd.f32 %v1342, %v1485
    %v1487 = vpop.f32.mrb[0].mxu0
    %1488 = vmatprep.mubr.bf16.mxu0 0
    %1489 = vmatmul.mubr.bf16.gmra.mrb[0].mxu0 %v407
    %v1490 = vpop.f32.mrb[0].mxu0
    %v1491 = vadd.f32 %v1346, %v1490
    %v1492 = vpop.f32.mrb[0].mxu0
    %v1493 = vpop.f32.mrb[0].mxu0
    %v1494 = vadd.f32 %v1350, %v1493
    %v1495 = vpop.f32.mrb[0].mxu0
    %1496 = vdwg.mxu0
    %v1497 = vtanh.pop %v1435
    %v1498 = vtanh.pop %v1438
    %v1499 = vtanh.pop %v1443
    %v1500 = vtanh.pop %v1446
    %v1501 = vtanh.pop %v1451
    %v1502 = vtanh.pop %v1454
    %v1503 = vtanh.pop %v1459
    %v1504 = vtanh.pop %v1462
    %v1505 = vtanh.pop %v1467
    %v1506 = vtanh.pop %v1470
    %v1507 = vtanh.pop %v1475
    %v1508 = vtanh.pop %v1478
    %v1509 = vtanh.pop %v1483
    %v1510 = vtanh.pop %v1486
    %v1511 = vtanh.pop %v1491
    %v1512 = vtanh.pop %v1494
    %1513 = vmatprep.subr.mxu0 0.0
    %1514 = vmatpush1.msra.mxu0 %v1497
    %1515 = vmatprep.subr.mxu0 0.0
    %1516 = vmatpush1.msra.mxu0 %v1498
    %1517 = vmatprep.subr.mxu0 0.0
    %1518 = vmatpush1.msra.mxu0 %v1499
    %1519 = vmatprep.subr.mxu0 0.0
    %1520 = vmatpush1.msra.mxu0 %v1500
    %1521 = vmatprep.subr.mxu0 0.0
    %1522 = vmatpush1.msra.mxu0 %v1501
    %1523 = vmatprep.subr.mxu0 0.0
    %1524 = vmatpush1.msra.mxu0 %v1502
    %1525 = vmatprep.subr.mxu0 0.0
    %1526 = vmatpush1.msra.mxu0 %v1503
    %1527 = vmatprep.subr.mxu0 0.0
    %1528 = vmatpush1.msra.mxu0 %v1504
    %1529 = vmatprep.subr.mxu0 0.0
    %1530 = vmatpush1.msra.mxu0 %v1505
    %1531 = vmatprep.subr.mxu0 0.0
    %1532 = vmatpush1.msra.mxu0 %v1506
    %1533 = vmatprep.subr.mxu0 0.0
    %1534 = vmatpush1.msra.mxu0 %v1507
    %1535 = vmatprep.subr.mxu0 0.0
    %1536 = vmatpush1.msra.mxu0 %v1508
    %1537 = vmatprep.subr.mxu0 0.0
    %1538 = vmatpush1.msra.mxu0 %v1509
    %1539 = vmatprep.subr.mxu0 0.0
    %1540 = vmatpush1.msra.mxu0 %v1510
    %1541 = vmatprep.subr.mxu0 0.0
    %1542 = vmatpush1.msra.mxu0 %v1511
    %1543 = vmatprep.subr.mxu0 0.0
    %1544 = vmatpush1.msra.mxu0 %v1512
    %1545 = vmatprep.subr.mxu0 0.0
    %1546 = vmatpush1.msra.mxu0 0.0
    %1547 = vmatprep.subr.mxu0 0.0
    %1548 = vmatpush1.msra.mxu0 0.0
    %1549 = vmatprep.subr.mxu0 0.0
    %1550 = vmatpush1.msra.mxu0 0.0
    %1551 = vmatprep.subr.mxu0 0.0
    %1552 = vmatpush1.msra.mxu0 0.0
    %1553 = vmatprep.subr.mxu0 0.0
    %1554 = vmatpush1.msra.mxu0 0.0
    %1555 = vmatprep.subr.mxu0 0.0
    %1556 = vmatpush1.msra.mxu0 0.0
    %1557 = vmatprep.subr.mxu0 0.0
    %1558 = vmatpush1.msra.mxu0 0.0
    %1559 = vmatprep.subr.mxu0 0.0
    %1560 = vmatpush1.msra.mxu0 0.0
    %1561 = vmatprep.subr.mxu0 0.0
    %1562 = vmatpush1.msra.mxu0 0.0
    %1563 = vmatprep.subr.mxu0 0.0
    %1564 = vmatpush1.msra.mxu0 0.0
    %1565 = vmatprep.subr.mxu0 0.0
    %1566 = vmatpush1.msra.mxu0 0.0
    %1567 = vmatprep.subr.mxu0 0.0
    %1568 = vmatpush1.msra.mxu0 0.0
    %1569 = vmatprep.subr.mxu0 0.0
    %1570 = vmatpush1.msra.mxu0 0.0
    %1571 = vmatprep.subr.mxu0 0.0
    %1572 = vmatpush1.msra.mxu0 0.0
    %1573 = vmatprep.subr.mxu0 0.0
    %1574 = vmatpush1.msra.mxu0 0.0
    %1575 = vmatprep.subr.mxu0 0.0
    %1576 = vmatpush1.msra.mxu0 0.0
    %1577 = vmatprep.mubr.f32.mxu0 0.0
    %1578 = vmatmul.mubr.f32.gmra.mrb[0].mxu0 %v271
    %v1579 = vpop.f32.mrb[0].mxu0
    %v1580 = vadd.f32 0.0, %v1579
    %v1581 = vpop.f32.mrb[0].mxu0
    %1582 = vdwg.mxu0
    %s1583 = scalar_lea.vmem [#allocation3], 256
    %v1584 = vld [vmem:[%s1583] sm:$0xf]
    %v1585 = vld [vmem:[%s1583 + $0x4] sm:$0xf]
    %v1586 = vld [vmem:[%s1583 + $0x8] sm:$0xf]
    %v1587 = vld [vmem:[%s1583 + $0xc] sm:$0xf]
    %v1588 = vld [vmem:[%s1583 + $0x10] sm:$0xf]
    %v1589 = vld [vmem:[%s1583 + $0x14] sm:$0xf]
    %v1590 = vld [vmem:[%s1583 + $0x18] sm:$0xf]
    %v1591 = vld [vmem:[%s1583 + $0x1c] sm:$0xf]
    %v1592 = vld [vmem:[%s1583 + $0x20] sm:$0xf]
    %v1593 = vld [vmem:[%s1583 + $0x24] sm:$0xf]
    %v1594 = vld [vmem:[%s1583 + $0x28] sm:$0xf]
    %v1595 = vld [vmem:[%s1583 + $0x2c] sm:$0xf]
    %v1596 = vld [vmem:[%s1583 + $0x30] sm:$0xf]
    %v1597 = vld [vmem:[%s1583 + $0x34] sm:$0xf]
    %v1598 = vld [vmem:[%s1583 + $0x38] sm:$0xf]
    %v1599 = vld [vmem:[%s1583 + $0x3c] sm:$0xf]
    %1600 = vset.pattern.permute.xlu0 4
    %1601 = vperm.xlu0 %1600, %v239
    %v1602 = vpop.permute.xlu0 %1601
    %1604 = vset.pattern.permute.xlu0 4
    %1605 = vperm.xlu0 %1604, %v240
    %v1606 = vpop.permute.xlu0 %1605
    %1608 = vset.pattern.permute.xlu0 4
    %1609 = vperm.xlu0 %1608, %v241
    %v1610 = vpop.permute.xlu0 %1609
    %1612 = vset.pattern.permute.xlu0 4
    %1613 = vperm.xlu0 %1612, %v242
    %v1614 = vpop.permute.xlu0 %1613
    %1616 = vset.pattern.permute.xlu0 4
    %1617 = vperm.xlu0 %1616, %v243
    %v1618 = vpop.permute.xlu0 %1617
    %1620 = vset.pattern.permute.xlu0 4
    %1621 = vperm.xlu0 %1620, %v244
    %v1622 = vpop.permute.xlu0 %1621
    %1624 = vset.pattern.permute.xlu0 4
    %1625 = vperm.xlu0 %1624, %v245
    %v1626 = vpop.permute.xlu0 %1625
    %1628 = vset.pattern.permute.xlu0 4
    %1629 = vperm.xlu0 %1628, %v246
    %v1630 = vpop.permute.xlu0 %1629
    %1632 = vset.pattern.permute.xlu0 4
    %1633 = vperm.xlu0 %1632, %v247
    %v1634 = vpop.permute.xlu0 %1633
    %1636 = vset.pattern.permute.xlu0 4
    %1637 = vperm.xlu0 %1636, %v248
    %v1638 = vpop.permute.xlu0 %1637
    %1640 = vset.pattern.permute.xlu0 4
    %1641 = vperm.xlu0 %1640, %v249
    %v1642 = vpop.permute.xlu0 %1641
    %1644 = vset.pattern.permute.xlu0 4
    %1645 = vperm.xlu0 %1644, %v250
    %v1646 = vpop.permute.xlu0 %1645
    %1648 = vset.pattern.permute.xlu0 4
    %1649 = vperm.xlu0 %1648, %v251
    %v1650 = vpop.permute.xlu0 %1649
    %1652 = vset.pattern.permute.xlu0 4
    %1653 = vperm.xlu0 %1652, %v252
    %v1654 = vpop.permute.xlu0 %1653
    %1656 = vset.pattern.permute.xlu0 4
    %1657 = vperm.xlu0 %1656, %v253
    %v1658 = vpop.permute.xlu0 %1657
    %1660 = vset.pattern.permute.xlu0 4
    %1661 = vperm.xlu0 %1660, %v254
    %v1662 = vpop.permute.xlu0 %1661
    %v1680 = vunpack.c.l.b16 %v1584
    %v1681 = vunpack.c.l.b16 %v1585
    %v1682 = vunpack.c.l.b16 %v1586
    %v1683 = vunpack.c.l.b16 %v1587
    %v1684 = vunpack.c.l.b16 %v1588
    %v1685 = vunpack.c.l.b16 %v1589
    %v1686 = vunpack.c.l.b16 %v1590
    %v1687 = vunpack.c.l.b16 %v1591
    %v1688 = vunpack.c.l.b16 %v1592
    %v1689 = vunpack.c.l.b16 %v1593
    %v1690 = vunpack.c.l.b16 %v1594
    %v1691 = vunpack.c.l.b16 %v1595
    %v1692 = vunpack.c.l.b16 %v1596
    %v1693 = vunpack.c.l.b16 %v1597
    %v1694 = vunpack.c.l.b16 %v1598
    %v1695 = vunpack.c.l.b16 %v1599
    %v1696 = vpack.c.b16 %v1681, %v1680
    %v1697 = vpack.c.b16 %v1683, %v1682
    %v1698 = vpack.c.b16 %v1685, %v1684
    %v1699 = vpack.c.b16 %v1687, %v1686
    %v1700 = vpack.c.b16 %v1689, %v1688
    %v1701 = vpack.c.b16 %v1691, %v1690
    %v1702 = vpack.c.b16 %v1693, %v1692
    %v1703 = vpack.c.b16 %v1695, %v1694
    %1712 = vmatprep.subr.bf16.mxu0 0
    %1713 = vmatpush1.bf16.msra.mxu0 %v1696
    %1714 = vmatprep.subr.bf16.mxu0 0
    %1715 = vmatpush1.bf16.msra.mxu0 %v1697
    %1716 = vmatprep.subr.bf16.mxu0 0
    %1717 = vmatpush1.bf16.msra.mxu0 %v1698
    %1718 = vmatprep.subr.bf16.mxu0 0
    %1719 = vmatpush1.bf16.msra.mxu0 %v1699
    %1720 = vmatprep.subr.bf16.mxu0 0
    %1721 = vmatpush1.bf16.msra.mxu0 %v1700
    %1722 = vmatprep.subr.bf16.mxu0 0
    %1723 = vmatpush1.bf16.msra.mxu0 %v1701
    %1724 = vmatprep.subr.bf16.mxu0 0
    %1725 = vmatpush1.bf16.msra.mxu0 %v1702
    %1726 = vmatprep.subr.bf16.mxu0 0
    %1727 = vmatpush1.bf16.msra.mxu0 %v1703
    %1728 = vmatprep.subr.bf16.mxu0 0
    %1729 = vmatpush1.bf16.msra.mxu0 0
    %1730 = vmatprep.subr.bf16.mxu0 0
    %1731 = vmatpush1.bf16.msra.mxu0 0
    %1732 = vmatprep.subr.bf16.mxu0 0
    %1733 = vmatpush1.bf16.msra.mxu0 0
    %1734 = vmatprep.subr.bf16.mxu0 0
    %1735 = vmatpush1.bf16.msra.mxu0 0
    %1736 = vmatprep.subr.bf16.mxu0 0
    %1737 = vmatpush1.bf16.msra.mxu0 0
    %1738 = vmatprep.subr.bf16.mxu0 0
    %1739 = vmatpush1.bf16.msra.mxu0 0
    %1740 = vmatprep.subr.bf16.mxu0 0
    %1741 = vmatpush1.bf16.msra.mxu0 0
    %1742 = vmatprep.subr.bf16.mxu0 0
    %1743 = vmatpush1.bf16.msra.mxu0 0
    %1744 = vmatprep.mubr.bf16.mxu0 0
    %1745 = vmatmul.mubr.bf16.gmra.mrb[0].mxu0 %v400
    %v1746 = vpop.f32.mrb[0].mxu0
    %v1747 = vadd.f32 %v1602, %v1746
    %v1748 = vpop.f32.mrb[0].mxu0
    %v1749 = vpop.f32.mrb[0].mxu0
    %v1750 = vadd.f32 %v1606, %v1749
    %v1751 = vpop.f32.mrb[0].mxu0
    %1752 = vmatprep.mubr.bf16.mxu0 0
    %1753 = vmatmul.mubr.bf16.gmra.mrb[0].mxu0 %v401
    %v1754 = vpop.f32.mrb[0].mxu0
    %v1755 = vadd.f32 %v1610, %v1754
    %v1756 = vpop.f32.mrb[0].mxu0
    %v1757 = vpop.f32.mrb[0].mxu0
    %v1758 = vadd.f32 %v1614, %v1757
    %v1759 = vpop.f32.mrb[0].mxu0
    %1760 = vmatprep.mubr.bf16.mxu0 0
    %1761 = vmatmul.mubr.bf16.gmra.mrb[0].mxu0 %v402
    %v1762 = vpop.f32.mrb[0].mxu0
    %v1763 = vadd.f32 %v1618, %v1762
    %v1764 = vpop.f32.mrb[0].mxu0
    %v1765 = vpop.f32.mrb[0].mxu0
    %v1766 = vadd.f32 %v1622, %v1765
    %v1767 = vpop.f32.mrb[0].mxu0
    %1768 = vmatprep.mubr.bf16.mxu0 0
    %1769 = vmatmul.mubr.bf16.gmra.mrb[0].mxu0 %v403
    %v1770 = vpop.f32.mrb[0].mxu0
    %v1771 = vadd.f32 %v1626, %v1770
    %v1772 = vpop.f32.mrb[0].mxu0
    %v1773 = vpop.f32.mrb[0].mxu0
    %v1774 = vadd.f32 %v1630, %v1773
    %v1775 = vpop.f32.mrb[0].mxu0
    %1776 = vmatprep.mubr.bf16.mxu0 0
    %1777 = vmatmul.mubr.bf16.gmra.mrb[0].mxu0 %v404
    %v1778 = vpop.f32.mrb[0].mxu0
    %v1779 = vadd.f32 %v1634, %v1778
    %v1780 = vpop.f32.mrb[0].mxu0
    %v1781 = vpop.f32.mrb[0].mxu0
    %v1782 = vadd.f32 %v1638, %v1781
    %v1783 = vpop.f32.mrb[0].mxu0
    %1784 = vmatprep.mubr.bf16.mxu0 0
    %1785 = vmatmul.mubr.bf16.gmra.mrb[0].mxu0 %v405
    %v1786 = vpop.f32.mrb[0].mxu0
    %v1787 = vadd.f32 %v1642, %v1786
    %v1788 = vpop.f32.mrb[0].mxu0
    %v1789 = vpop.f32.mrb[0].mxu0
    %v1790 = vadd.f32 %v1646, %v1789
    %v1791 = vpop.f32.mrb[0].mxu0
    %1792 = vmatprep.mubr.bf16.mxu0 0
    %1793 = vmatmul.mubr.bf16.gmra.mrb[0].mxu0 %v406
    %v1794 = vpop.f32.mrb[0].mxu0
    %v1795 = vadd.f32 %v1650, %v1794
    %v1796 = vpop.f32.mrb[0].mxu0
    %v1797 = vpop.f32.mrb[0].mxu0
    %v1798 = vadd.f32 %v1654, %v1797
    %v1799 = vpop.f32.mrb[0].mxu0
    %1800 = vmatprep.mubr.bf16.mxu0 0
    %1801 = vmatmul.mubr.bf16.gmra.mrb[0].mxu0 %v407
    %v1802 = vpop.f32.mrb[0].mxu0
    %v1803 = vadd.f32 %v1658, %v1802
    %v1804 = vpop.f32.mrb[0].mxu0
    %v1805 = vpop.f32.mrb[0].mxu0
    %v1806 = vadd.f32 %v1662, %v1805
    %v1807 = vpop.f32.mrb[0].mxu0
    %1808 = vdwg.mxu0
    %v1809 = vtanh.pop %v1747
    %v1810 = vtanh.pop %v1750
    %v1811 = vtanh.pop %v1755
    %v1812 = vtanh.pop %v1758
    %v1813 = vtanh.pop %v1763
    %v1814 = vtanh.pop %v1766
    %v1815 = vtanh.pop %v1771
    %v1816 = vtanh.pop %v1774
    %v1817 = vtanh.pop %v1779
    %v1818 = vtanh.pop %v1782
    %v1819 = vtanh.pop %v1787
    %v1820 = vtanh.pop %v1790
    %v1821 = vtanh.pop %v1795
    %v1822 = vtanh.pop %v1798
    %v1823 = vtanh.pop %v1803
    %v1824 = vtanh.pop %v1806
    %1825 = vmatprep.subr.mxu0 0.0
    %1826 = vmatpush1.msra.mxu0 %v1809
    %1827 = vmatprep.subr.mxu0 0.0
    %1828 = vmatpush1.msra.mxu0 %v1810
    %1829 = vmatprep.subr.mxu0 0.0
    %1830 = vmatpush1.msra.mxu0 %v1811
    %1831 = vmatprep.subr.mxu0 0.0
    %1832 = vmatpush1.msra.mxu0 %v1812
    %1833 = vmatprep.subr.mxu0 0.0
    %1834 = vmatpush1.msra.mxu0 %v1813
    %1835 = vmatprep.subr.mxu0 0.0
    %1836 = vmatpush1.msra.mxu0 %v1814
    %1837 = vmatprep.subr.mxu0 0.0
    %1838 = vmatpush1.msra.mxu0 %v1815
    %1839 = vmatprep.subr.mxu0 0.0
    %1840 = vmatpush1.msra.mxu0 %v1816
    %1841 = vmatprep.subr.mxu0 0.0
    %1842 = vmatpush1.msra.mxu0 %v1817
    %1843 = vmatprep.subr.mxu0 0.0
    %1844 = vmatpush1.msra.mxu0 %v1818
    %1845 = vmatprep.subr.mxu0 0.0
    %1846 = vmatpush1.msra.mxu0 %v1819
    %1847 = vmatprep.subr.mxu0 0.0
    %1848 = vmatpush1.msra.mxu0 %v1820
    %1849 = vmatprep.subr.mxu0 0.0
    %1850 = vmatpush1.msra.mxu0 %v1821
    %1851 = vmatprep.subr.mxu0 0.0
    %1852 = vmatpush1.msra.mxu0 %v1822
    %1853 = vmatprep.subr.mxu0 0.0
    %1854 = vmatpush1.msra.mxu0 %v1823
    %1855 = vmatprep.subr.mxu0 0.0
    %1856 = vmatpush1.msra.mxu0 %v1824
    %1857 = vmatprep.subr.mxu0 0.0
    %1858 = vmatpush1.msra.mxu0 0.0
    %1859 = vmatprep.subr.mxu0 0.0
    %1860 = vmatpush1.msra.mxu0 0.0
    %1861 = vmatprep.subr.mxu0 0.0
    %1862 = vmatpush1.msra.mxu0 0.0
    %1863 = vmatprep.subr.mxu0 0.0
    %1864 = vmatpush1.msra.mxu0 0.0
    %1865 = vmatprep.subr.mxu0 0.0
    %1866 = vmatpush1.msra.mxu0 0.0
    %1867 = vmatprep.subr.mxu0 0.0
    %1868 = vmatpush1.msra.mxu0 0.0
    %1869 = vmatprep.subr.mxu0 0.0
    %1870 = vmatpush1.msra.mxu0 0.0
    %1871 = vmatprep.subr.mxu0 0.0
    %1872 = vmatpush1.msra.mxu0 0.0
    %1873 = vmatprep.subr.mxu0 0.0
    %1874 = vmatpush1.msra.mxu0 0.0
    %1875 = vmatprep.subr.mxu0 0.0
    %1876 = vmatpush1.msra.mxu0 0.0
    %1877 = vmatprep.subr.mxu0 0.0
    %1878 = vmatpush1.msra.mxu0 0.0
    %1879 = vmatprep.subr.mxu0 0.0
    %1880 = vmatpush1.msra.mxu0 0.0
    %1881 = vmatprep.subr.mxu0 0.0
    %1882 = vmatpush1.msra.mxu0 0.0
    %1883 = vmatprep.subr.mxu0 0.0
    %1884 = vmatpush1.msra.mxu0 0.0
    %1885 = vmatprep.subr.mxu0 0.0
    %1886 = vmatpush1.msra.mxu0 0.0
    %1887 = vmatprep.subr.mxu0 0.0
    %1888 = vmatpush1.msra.mxu0 0.0
    %1889 = vmatprep.mubr.f32.mxu0 0.0
    %1890 = vmatmul.mubr.f32.gmra.mrb[0].mxu0 %v271
    %v1891 = vpop.f32.mrb[0].mxu0
    %v1892 = vadd.f32 0.0, %v1891
    %v1893 = vpop.f32.mrb[0].mxu0
    %1894 = vdwg.mxu0
    %s1895 = scalar_lea.vmem [#allocation3], 320
    %v1896 = vld [vmem:[%s1895] sm:$0xf]
    %v1897 = vld [vmem:[%s1895 + $0x4] sm:$0xf]
    %v1898 = vld [vmem:[%s1895 + $0x8] sm:$0xf]
    %v1899 = vld [vmem:[%s1895 + $0xc] sm:$0xf]
    %v1900 = vld [vmem:[%s1895 + $0x10] sm:$0xf]
    %v1901 = vld [vmem:[%s1895 + $0x14] sm:$0xf]
    %v1902 = vld [vmem:[%s1895 + $0x18] sm:$0xf]
    %v1903 = vld [vmem:[%s1895 + $0x1c] sm:$0xf]
    %v1904 = vld [vmem:[%s1895 + $0x20] sm:$0xf]
    %v1905 = vld [vmem:[%s1895 + $0x24] sm:$0xf]
    %v1906 = vld [vmem:[%s1895 + $0x28] sm:$0xf]
    %v1907 = vld [vmem:[%s1895 + $0x2c] sm:$0xf]
    %v1908 = vld [vmem:[%s1895 + $0x30] sm:$0xf]
    %v1909 = vld [vmem:[%s1895 + $0x34] sm:$0xf]
    %v1910 = vld [vmem:[%s1895 + $0x38] sm:$0xf]
    %v1911 = vld [vmem:[%s1895 + $0x3c] sm:$0xf]
    %1912 = vset.pattern.permute.xlu0 5
    %1913 = vperm.xlu0 %1912, %v239
    %v1914 = vpop.permute.xlu0 %1913
    %1916 = vset.pattern.permute.xlu0 5
    %1917 = vperm.xlu0 %1916, %v240
    %v1918 = vpop.permute.xlu0 %1917
    %1920 = vset.pattern.permute.xlu0 5
    %1921 = vperm.xlu0 %1920, %v241
    %v1922 = vpop.permute.xlu0 %1921
    %1924 = vset.pattern.permute.xlu0 5
    %1925 = vperm.xlu0 %1924, %v242
    %v1926 = vpop.permute.xlu0 %1925
    %1928 = vset.pattern.permute.xlu0 5
    %1929 = vperm.xlu0 %1928, %v243
    %v1930 = vpop.permute.xlu0 %1929
    %1932 = vset.pattern.permute.xlu0 5
    %1933 = vperm.xlu0 %1932, %v244
    %v1934 = vpop.permute.xlu0 %1933
    %1936 = vset.pattern.permute.xlu0 5
    %1937 = vperm.xlu0 %1936, %v245
    %v1938 = vpop.permute.xlu0 %1937
    %1940 = vset.pattern.permute.xlu0 5
    %1941 = vperm.xlu0 %1940, %v246
    %v1942 = vpop.permute.xlu0 %1941
    %1944 = vset.pattern.permute.xlu0 5
    %1945 = vperm.xlu0 %1944, %v247
    %v1946 = vpop.permute.xlu0 %1945
    %1948 = vset.pattern.permute.xlu0 5
    %1949 = vperm.xlu0 %1948, %v248
    %v1950 = vpop.permute.xlu0 %1949
    %1952 = vset.pattern.permute.xlu0 5
    %1953 = vperm.xlu0 %1952, %v249
    %v1954 = vpop.permute.xlu0 %1953
    %1956 = vset.pattern.permute.xlu0 5
    %1957 = vperm.xlu0 %1956, %v250
    %v1958 = vpop.permute.xlu0 %1957
    %1960 = vset.pattern.permute.xlu0 5
    %1961 = vperm.xlu0 %1960, %v251
    %v1962 = vpop.permute.xlu0 %1961
    %1964 = vset.pattern.permute.xlu0 5
    %1965 = vperm.xlu0 %1964, %v252
    %v1966 = vpop.permute.xlu0 %1965
    %1968 = vset.pattern.permute.xlu0 5
    %1969 = vperm.xlu0 %1968, %v253
    %v1970 = vpop.permute.xlu0 %1969
    %1972 = vset.pattern.permute.xlu0 5
    %1973 = vperm.xlu0 %1972, %v254
    %v1974 = vpop.permute.xlu0 %1973
    %v1992 = vunpack.c.l.b16 %v1896
    %v1993 = vunpack.c.l.b16 %v1897
    %v1994 = vunpack.c.l.b16 %v1898
    %v1995 = vunpack.c.l.b16 %v1899
    %v1996 = vunpack.c.l.b16 %v1900
    %v1997 = vunpack.c.l.b16 %v1901
    %v1998 = vunpack.c.l.b16 %v1902
    %v1999 = vunpack.c.l.b16 %v1903
    %v2000 = vunpack.c.l.b16 %v1904
    %v2001 = vunpack.c.l.b16 %v1905
    %v2002 = vunpack.c.l.b16 %v1906
    %v2003 = vunpack.c.l.b16 %v1907
    %v2004 = vunpack.c.l.b16 %v1908
    %v2005 = vunpack.c.l.b16 %v1909
    %v2006 = vunpack.c.l.b16 %v1910
    %v2007 = vunpack.c.l.b16 %v1911
    %v2008 = vpack.c.b16 %v1993, %v1992
    %v2009 = vpack.c.b16 %v1995, %v1994
    %v2010 = vpack.c.b16 %v1997, %v1996
    %v2011 = vpack.c.b16 %v1999, %v1998
    %v2012 = vpack.c.b16 %v2001, %v2000
    %v2013 = vpack.c.b16 %v2003, %v2002
    %v2014 = vpack.c.b16 %v2005, %v2004
    %v2015 = vpack.c.b16 %v2007, %v2006
    %2024 = vmatprep.subr.bf16.mxu0 0
    %2025 = vmatpush1.bf16.msra.mxu0 %v2008
    %2026 = vmatprep.subr.bf16.mxu0 0
    %2027 = vmatpush1.bf16.msra.mxu0 %v2009
    %2028 = vmatprep.subr.bf16.mxu0 0
    %2029 = vmatpush1.bf16.msra.mxu0 %v2010
    %2030 = vmatprep.subr.bf16.mxu0 0
    %2031 = vmatpush1.bf16.msra.mxu0 %v2011
    %2032 = vmatprep.subr.bf16.mxu0 0
    %2033 = vmatpush1.bf16.msra.mxu0 %v2012
    %2034 = vmatprep.subr.bf16.mxu0 0
    %2035 = vmatpush1.bf16.msra.mxu0 %v2013
    %2036 = vmatprep.subr.bf16.mxu0 0
    %2037 = vmatpush1.bf16.msra.mxu0 %v2014
    %2038 = vmatprep.subr.bf16.mxu0 0
    %2039 = vmatpush1.bf16.msra.mxu0 %v2015
    %2040 = vmatprep.subr.bf16.mxu0 0
    %2041 = vmatpush1.bf16.msra.mxu0 0
    %2042 = vmatprep.subr.bf16.mxu0 0
    %2043 = vmatpush1.bf16.msra.mxu0 0
    %2044 = vmatprep.subr.bf16.mxu0 0
    %2045 = vmatpush1.bf16.msra.mxu0 0
    %2046 = vmatprep.subr.bf16.mxu0 0
    %2047 = vmatpush1.bf16.msra.mxu0 0
    %2048 = vmatprep.subr.bf16.mxu0 0
    %2049 = vmatpush1.bf16.msra.mxu0 0
    %2050 = vmatprep.subr.bf16.mxu0 0
    %2051 = vmatpush1.bf16.msra.mxu0 0
    %2052 = vmatprep.subr.bf16.mxu0 0
    %2053 = vmatpush1.bf16.msra.mxu0 0
    %2054 = vmatprep.subr.bf16.mxu0 0
    %2055 = vmatpush1.bf16.msra.mxu0 0
    %2056 = vmatprep.mubr.bf16.mxu0 0
    %2057 = vmatmul.mubr.bf16.gmra.mrb[0].mxu0 %v400
    %v2058 = vpop.f32.mrb[0].mxu0
    %v2059 = vadd.f32 %v1914, %v2058
    %v2060 = vpop.f32.mrb[0].mxu0
    %v2061 = vpop.f32.mrb[0].mxu0
    %v2062 = vadd.f32 %v1918, %v2061
    %v2063 = vpop.f32.mrb[0].mxu0
    %2064 = vmatprep.mubr.bf16.mxu0 0
    %2065 = vmatmul.mubr.bf16.gmra.mrb[0].mxu0 %v401
    %v2066 = vpop.f32.mrb[0].mxu0
    %v2067 = vadd.f32 %v1922, %v2066
    %v2068 = vpop.f32.mrb[0].mxu0
    %v2069 = vpop.f32.mrb[0].mxu0
    %v2070 = vadd.f32 %v1926, %v2069
    %v2071 = vpop.f32.mrb[0].mxu0
    %2072 = vmatprep.mubr.bf16.mxu0 0
    %2073 = vmatmul.mubr.bf16.gmra.mrb[0].mxu0 %v402
    %v2074 = vpop.f32.mrb[0].mxu0
    %v2075 = vadd.f32 %v1930, %v2074
    %v2076 = vpop.f32.mrb[0].mxu0
    %v2077 = vpop.f32.mrb[0].mxu0
    %v2078 = vadd.f32 %v1934, %v2077
    %v2079 = vpop.f32.mrb[0].mxu0
    %2080 = vmatprep.mubr.bf16.mxu0 0
    %2081 = vmatmul.mubr.bf16.gmra.mrb[0].mxu0 %v403
    %v2082 = vpop.f32.mrb[0].mxu0
    %v2083 = vadd.f32 %v1938, %v2082
    %v2084 = vpop.f32.mrb[0].mxu0
    %v2085 = vpop.f32.mrb[0].mxu0
    %v2086 = vadd.f32 %v1942, %v2085
    %v2087 = vpop.f32.mrb[0].mxu0
    %2088 = vmatprep.mubr.bf16.mxu0 0
    %2089 = vmatmul.mubr.bf16.gmra.mrb[0].mxu0 %v404
    %v2090 = vpop.f32.mrb[0].mxu0
    %v2091 = vadd.f32 %v1946, %v2090
    %v2092 = vpop.f32.mrb[0].mxu0
    %v2093 = vpop.f32.mrb[0].mxu0
    %v2094 = vadd.f32 %v1950, %v2093
    %v2095 = vpop.f32.mrb[0].mxu0
    %2096 = vmatprep.mubr.bf16.mxu0 0
    %2097 = vmatmul.mubr.bf16.gmra.mrb[0].mxu0 %v405
    %v2098 = vpop.f32.mrb[0].mxu0
    %v2099 = vadd.f32 %v1954, %v2098
    %v2100 = vpop.f32.mrb[0].mxu0
    %v2101 = vpop.f32.mrb[0].mxu0
    %v2102 = vadd.f32 %v1958, %v2101
    %v2103 = vpop.f32.mrb[0].mxu0
    %2104 = vmatprep.mubr.bf16.mxu0 0
    %2105 = vmatmul.mubr.bf16.gmra.mrb[0].mxu0 %v406
    %v2106 = vpop.f32.mrb[0].mxu0
    %v2107 = vadd.f32 %v1962, %v2106
    %v2108 = vpop.f32.mrb[0].mxu0
    %v2109 = vpop.f32.mrb[0].mxu0
    %v2110 = vadd.f32 %v1966, %v2109
    %v2111 = vpop.f32.mrb[0].mxu0
    %2112 = vmatprep.mubr.bf16.mxu0 0
    %2113 = vmatmul.mubr.bf16.gmra.mrb[0].mxu0 %v407
    %v2114 = vpop.f32.mrb[0].mxu0
    %v2115 = vadd.f32 %v1970, %v2114
    %v2116 = vpop.f32.mrb[0].mxu0
    %v2117 = vpop.f32.mrb[0].mxu0
    %v2118 = vadd.f32 %v1974, %v2117
    %v2119 = vpop.f32.mrb[0].mxu0
    %2120 = vdwg.mxu0
    %v2121 = vtanh.pop %v2059
    %v2122 = vtanh.pop %v2062
    %v2123 = vtanh.pop %v2067
    %v2124 = vtanh.pop %v2070
    %v2125 = vtanh.pop %v2075
    %v2126 = vtanh.pop %v2078
    %v2127 = vtanh.pop %v2083
    %v2128 = vtanh.pop %v2086
    %v2129 = vtanh.pop %v2091
    %v2130 = vtanh.pop %v2094
    %v2131 = vtanh.pop %v2099
    %v2132 = vtanh.pop %v2102
    %v2133 = vtanh.pop %v2107
    %v2134 = vtanh.pop %v2110
    %v2135 = vtanh.pop %v2115
    %v2136 = vtanh.pop %v2118
    %2137 = vmatprep.subr.mxu0 0.0
    %2138 = vmatpush1.msra.mxu0 %v2121
    %2139 = vmatprep.subr.mxu0 0.0
    %2140 = vmatpush1.msra.mxu0 %v2122
    %2141 = vmatprep.subr.mxu0 0.0
    %2142 = vmatpush1.msra.mxu0 %v2123
    %2143 = vmatprep.subr.mxu0 0.0
    %2144 = vmatpush1.msra.mxu0 %v2124
    %2145 = vmatprep.subr.mxu0 0.0
    %2146 = vmatpush1.msra.mxu0 %v2125
    %2147 = vmatprep.subr.mxu0 0.0
    %2148 = vmatpush1.msra.mxu0 %v2126
    %2149 = vmatprep.subr.mxu0 0.0
    %2150 = vmatpush1.msra.mxu0 %v2127
    %2151 = vmatprep.subr.mxu0 0.0
    %2152 = vmatpush1.msra.mxu0 %v2128
    %2153 = vmatprep.subr.mxu0 0.0
    %2154 = vmatpush1.msra.mxu0 %v2129
    %2155 = vmatprep.subr.mxu0 0.0
    %2156 = vmatpush1.msra.mxu0 %v2130
    %2157 = vmatprep.subr.mxu0 0.0
    %2158 = vmatpush1.msra.mxu0 %v2131
    %2159 = vmatprep.subr.mxu0 0.0
    %2160 = vmatpush1.msra.mxu0 %v2132
    %2161 = vmatprep.subr.mxu0 0.0
    %2162 = vmatpush1.msra.mxu0 %v2133
    %2163 = vmatprep.subr.mxu0 0.0
    %2164 = vmatpush1.msra.mxu0 %v2134
    %2165 = vmatprep.subr.mxu0 0.0
    %2166 = vmatpush1.msra.mxu0 %v2135
    %2167 = vmatprep.subr.mxu0 0.0
    %2168 = vmatpush1.msra.mxu0 %v2136
    %2169 = vmatprep.subr.mxu0 0.0
    %2170 = vmatpush1.msra.mxu0 0.0
    %2171 = vmatprep.subr.mxu0 0.0
    %2172 = vmatpush1.msra.mxu0 0.0
    %2173 = vmatprep.subr.mxu0 0.0
    %2174 = vmatpush1.msra.mxu0 0.0
    %2175 = vmatprep.subr.mxu0 0.0
    %2176 = vmatpush1.msra.mxu0 0.0
    %2177 = vmatprep.subr.mxu0 0.0
    %2178 = vmatpush1.msra.mxu0 0.0
    %2179 = vmatprep.subr.mxu0 0.0
    %2180 = vmatpush1.msra.mxu0 0.0
    %2181 = vmatprep.subr.mxu0 0.0
    %2182 = vmatpush1.msra.mxu0 0.0
    %2183 = vmatprep.subr.mxu0 0.0
    %2184 = vmatpush1.msra.mxu0 0.0
    %2185 = vmatprep.subr.mxu0 0.0
    %2186 = vmatpush1.msra.mxu0 0.0
    %2187 = vmatprep.subr.mxu0 0.0
    %2188 = vmatpush1.msra.mxu0 0.0
    %2189 = vmatprep.subr.mxu0 0.0
    %2190 = vmatpush1.msra.mxu0 0.0
    %2191 = vmatprep.subr.mxu0 0.0
    %2192 = vmatpush1.msra.mxu0 0.0
    %2193 = vmatprep.subr.mxu0 0.0
    %2194 = vmatpush1.msra.mxu0 0.0
    %2195 = vmatprep.subr.mxu0 0.0
    %2196 = vmatpush1.msra.mxu0 0.0
    %2197 = vmatprep.subr.mxu0 0.0
    %2198 = vmatpush1.msra.mxu0 0.0
    %2199 = vmatprep.subr.mxu0 0.0
    %2200 = vmatpush1.msra.mxu0 0.0
    %2201 = vmatprep.mubr.f32.mxu0 0.0
    %2202 = vmatmul.mubr.f32.gmra.mrb[0].mxu0 %v271
    %v2203 = vpop.f32.mrb[0].mxu0
    %v2204 = vadd.f32 0.0, %v2203
    %v2205 = vpop.f32.mrb[0].mxu0
    %2206 = vdwg.mxu0
    %s2207 = scalar_lea.vmem [#allocation3], 384
    %v2208 = vld [vmem:[%s2207] sm:$0xf]
    %v2209 = vld [vmem:[%s2207 + $0x4] sm:$0xf]
    %v2210 = vld [vmem:[%s2207 + $0x8] sm:$0xf]
    %v2211 = vld [vmem:[%s2207 + $0xc] sm:$0xf]
    %v2212 = vld [vmem:[%s2207 + $0x10] sm:$0xf]
    %v2213 = vld [vmem:[%s2207 + $0x14] sm:$0xf]
    %v2214 = vld [vmem:[%s2207 + $0x18] sm:$0xf]
    %v2215 = vld [vmem:[%s2207 + $0x1c] sm:$0xf]
    %v2216 = vld [vmem:[%s2207 + $0x20] sm:$0xf]
    %v2217 = vld [vmem:[%s2207 + $0x24] sm:$0xf]
    %v2218 = vld [vmem:[%s2207 + $0x28] sm:$0xf]
    %v2219 = vld [vmem:[%s2207 + $0x2c] sm:$0xf]
    %v2220 = vld [vmem:[%s2207 + $0x30] sm:$0xf]
    %v2221 = vld [vmem:[%s2207 + $0x34] sm:$0xf]
    %v2222 = vld [vmem:[%s2207 + $0x38] sm:$0xf]
    %v2223 = vld [vmem:[%s2207 + $0x3c] sm:$0xf]
    %2224 = vset.pattern.permute.xlu0 6
    %2225 = vperm.xlu0 %2224, %v239
    %v2226 = vpop.permute.xlu0 %2225
    %2228 = vset.pattern.permute.xlu0 6
    %2229 = vperm.xlu0 %2228, %v240
    %v2230 = vpop.permute.xlu0 %2229
    %2232 = vset.pattern.permute.xlu0 6
    %2233 = vperm.xlu0 %2232, %v241
    %v2234 = vpop.permute.xlu0 %2233
    %2236 = vset.pattern.permute.xlu0 6
    %2237 = vperm.xlu0 %2236, %v242
    %v2238 = vpop.permute.xlu0 %2237
    %2240 = vset.pattern.permute.xlu0 6
    %2241 = vperm.xlu0 %2240, %v243
    %v2242 = vpop.permute.xlu0 %2241
    %2244 = vset.pattern.permute.xlu0 6
    %2245 = vperm.xlu0 %2244, %v244
    %v2246 = vpop.permute.xlu0 %2245
    %2248 = vset.pattern.permute.xlu0 6
    %2249 = vperm.xlu0 %2248, %v245
    %v2250 = vpop.permute.xlu0 %2249
    %2252 = vset.pattern.permute.xlu0 6
    %2253 = vperm.xlu0 %2252, %v246
    %v2254 = vpop.permute.xlu0 %2253
    %2256 = vset.pattern.permute.xlu0 6
    %2257 = vperm.xlu0 %2256, %v247
    %v2258 = vpop.permute.xlu0 %2257
    %2260 = vset.pattern.permute.xlu0 6
    %2261 = vperm.xlu0 %2260, %v248
    %v2262 = vpop.permute.xlu0 %2261
    %2264 = vset.pattern.permute.xlu0 6
    %2265 = vperm.xlu0 %2264, %v249
    %v2266 = vpop.permute.xlu0 %2265
    %2268 = vset.pattern.permute.xlu0 6
    %2269 = vperm.xlu0 %2268, %v250
    %v2270 = vpop.permute.xlu0 %2269
    %2272 = vset.pattern.permute.xlu0 6
    %2273 = vperm.xlu0 %2272, %v251
    %v2274 = vpop.permute.xlu0 %2273
    %2276 = vset.pattern.permute.xlu0 6
    %2277 = vperm.xlu0 %2276, %v252
    %v2278 = vpop.permute.xlu0 %2277
    %2280 = vset.pattern.permute.xlu0 6
    %2281 = vperm.xlu0 %2280, %v253
    %v2282 = vpop.permute.xlu0 %2281
    %2284 = vset.pattern.permute.xlu0 6
    %2285 = vperm.xlu0 %2284, %v254
    %v2286 = vpop.permute.xlu0 %2285
    %v2304 = vunpack.c.l.b16 %v2208
    %v2305 = vunpack.c.l.b16 %v2209
    %v2306 = vunpack.c.l.b16 %v2210
    %v2307 = vunpack.c.l.b16 %v2211
    %v2308 = vunpack.c.l.b16 %v2212
    %v2309 = vunpack.c.l.b16 %v2213
    %v2310 = vunpack.c.l.b16 %v2214
    %v2311 = vunpack.c.l.b16 %v2215
    %v2312 = vunpack.c.l.b16 %v2216
    %v2313 = vunpack.c.l.b16 %v2217
    %v2314 = vunpack.c.l.b16 %v2218
    %v2315 = vunpack.c.l.b16 %v2219
    %v2316 = vunpack.c.l.b16 %v2220
    %v2317 = vunpack.c.l.b16 %v2221
    %v2318 = vunpack.c.l.b16 %v2222
    %v2319 = vunpack.c.l.b16 %v2223
    %v2320 = vpack.c.b16 %v2305, %v2304
    %v2321 = vpack.c.b16 %v2307, %v2306
    %v2322 = vpack.c.b16 %v2309, %v2308
    %v2323 = vpack.c.b16 %v2311, %v2310
    %v2324 = vpack.c.b16 %v2313, %v2312
    %v2325 = vpack.c.b16 %v2315, %v2314
    %v2326 = vpack.c.b16 %v2317, %v2316
    %v2327 = vpack.c.b16 %v2319, %v2318
    %2336 = vmatprep.subr.bf16.mxu0 0
    %2337 = vmatpush1.bf16.msra.mxu0 %v2320
    %2338 = vmatprep.subr.bf16.mxu0 0
    %2339 = vmatpush1.bf16.msra.mxu0 %v2321
    %2340 = vmatprep.subr.bf16.mxu0 0
    %2341 = vmatpush1.bf16.msra.mxu0 %v2322
    %2342 = vmatprep.subr.bf16.mxu0 0
    %2343 = vmatpush1.bf16.msra.mxu0 %v2323
    %2344 = vmatprep.subr.bf16.mxu0 0
    %2345 = vmatpush1.bf16.msra.mxu0 %v2324
    %2346 = vmatprep.subr.bf16.mxu0 0
    %2347 = vmatpush1.bf16.msra.mxu0 %v2325
    %2348 = vmatprep.subr.bf16.mxu0 0
    %2349 = vmatpush1.bf16.msra.mxu0 %v2326
    %2350 = vmatprep.subr.bf16.mxu0 0
    %2351 = vmatpush1.bf16.msra.mxu0 %v2327
    %2352 = vmatprep.subr.bf16.mxu0 0
    %2353 = vmatpush1.bf16.msra.mxu0 0
    %2354 = vmatprep.subr.bf16.mxu0 0
    %2355 = vmatpush1.bf16.msra.mxu0 0
    %2356 = vmatprep.subr.bf16.mxu0 0
    %2357 = vmatpush1.bf16.msra.mxu0 0
    %2358 = vmatprep.subr.bf16.mxu0 0
    %2359 = vmatpush1.bf16.msra.mxu0 0
    %2360 = vmatprep.subr.bf16.mxu0 0
    %2361 = vmatpush1.bf16.msra.mxu0 0
    %2362 = vmatprep.subr.bf16.mxu0 0
    %2363 = vmatpush1.bf16.msra.mxu0 0
    %2364 = vmatprep.subr.bf16.mxu0 0
    %2365 = vmatpush1.bf16.msra.mxu0 0
    %2366 = vmatprep.subr.bf16.mxu0 0
    %2367 = vmatpush1.bf16.msra.mxu0 0
    %2368 = vmatprep.mubr.bf16.mxu0 0
    %2369 = vmatmul.mubr.bf16.gmra.mrb[0].mxu0 %v400
    %v2370 = vpop.f32.mrb[0].mxu0
    %v2371 = vadd.f32 %v2226, %v2370
    %v2372 = vpop.f32.mrb[0].mxu0
    %v2373 = vpop.f32.mrb[0].mxu0
    %v2374 = vadd.f32 %v2230, %v2373
    %v2375 = vpop.f32.mrb[0].mxu0
    %2376 = vmatprep.mubr.bf16.mxu0 0
    %2377 = vmatmul.mubr.bf16.gmra.mrb[0].mxu0 %v401
    %v2378 = vpop.f32.mrb[0].mxu0
    %v2379 = vadd.f32 %v2234, %v2378
    %v2380 = vpop.f32.mrb[0].mxu0
    %v2381 = vpop.f32.mrb[0].mxu0
    %v2382 = vadd.f32 %v2238, %v2381
    %v2383 = vpop.f32.mrb[0].mxu0
    %2384 = vmatprep.mubr.bf16.mxu0 0
    %2385 = vmatmul.mubr.bf16.gmra.mrb[0].mxu0 %v402
    %v2386 = vpop.f32.mrb[0].mxu0
    %v2387 = vadd.f32 %v2242, %v2386
    %v2388 = vpop.f32.mrb[0].mxu0
    %v2389 = vpop.f32.mrb[0].mxu0
    %v2390 = vadd.f32 %v2246, %v2389
    %v2391 = vpop.f32.mrb[0].mxu0
    %2392 = vmatprep.mubr.bf16.mxu0 0
    %2393 = vmatmul.mubr.bf16.gmra.mrb[0].mxu0 %v403
    %v2394 = vpop.f32.mrb[0].mxu0
    %v2395 = vadd.f32 %v2250, %v2394
    %v2396 = vpop.f32.mrb[0].mxu0
    %v2397 = vpop.f32.mrb[0].mxu0
    %v2398 = vadd.f32 %v2254, %v2397
    %v2399 = vpop.f32.mrb[0].mxu0
    %2400 = vmatprep.mubr.bf16.mxu0 0
    %2401 = vmatmul.mubr.bf16.gmra.mrb[0].mxu0 %v404
    %v2402 = vpop.f32.mrb[0].mxu0
    %v2403 = vadd.f32 %v2258, %v2402
    %v2404 = vpop.f32.mrb[0].mxu0
    %v2405 = vpop.f32.mrb[0].mxu0
    %v2406 = vadd.f32 %v2262, %v2405
    %v2407 = vpop.f32.mrb[0].mxu0
    %2408 = vmatprep.mubr.bf16.mxu0 0
    %2409 = vmatmul.mubr.bf16.gmra.mrb[0].mxu0 %v405
    %v2410 = vpop.f32.mrb[0].mxu0
    %v2411 = vadd.f32 %v2266, %v2410
    %v2412 = vpop.f32.mrb[0].mxu0
    %v2413 = vpop.f32.mrb[0].mxu0
    %v2414 = vadd.f32 %v2270, %v2413
    %v2415 = vpop.f32.mrb[0].mxu0
    %2416 = vmatprep.mubr.bf16.mxu0 0
    %2417 = vmatmul.mubr.bf16.gmra.mrb[0].mxu0 %v406
    %v2418 = vpop.f32.mrb[0].mxu0
    %v2419 = vadd.f32 %v2274, %v2418
    %v2420 = vpop.f32.mrb[0].mxu0
    %v2421 = vpop.f32.mrb[0].mxu0
    %v2422 = vadd.f32 %v2278, %v2421
    %v2423 = vpop.f32.mrb[0].mxu0
    %2424 = vmatprep.mubr.bf16.mxu0 0
    %2425 = vmatmul.mubr.bf16.gmra.mrb[0].mxu0 %v407
    %v2426 = vpop.f32.mrb[0].mxu0
    %v2427 = vadd.f32 %v2282, %v2426
    %v2428 = vpop.f32.mrb[0].mxu0
    %v2429 = vpop.f32.mrb[0].mxu0
    %v2430 = vadd.f32 %v2286, %v2429
    %v2431 = vpop.f32.mrb[0].mxu0
    %2432 = vdwg.mxu0
    %v2433 = vtanh.pop %v2371
    %v2434 = vtanh.pop %v2374
    %v2435 = vtanh.pop %v2379
    %v2436 = vtanh.pop %v2382
    %v2437 = vtanh.pop %v2387
    %v2438 = vtanh.pop %v2390
    %v2439 = vtanh.pop %v2395
    %v2440 = vtanh.pop %v2398
    %v2441 = vtanh.pop %v2403
    %v2442 = vtanh.pop %v2406
    %v2443 = vtanh.pop %v2411
    %v2444 = vtanh.pop %v2414
    %v2445 = vtanh.pop %v2419
    %v2446 = vtanh.pop %v2422
    %v2447 = vtanh.pop %v2427
    %v2448 = vtanh.pop %v2430
    %2449 = vmatprep.subr.mxu0 0.0
    %2450 = vmatpush1.msra.mxu0 %v2433
    %2451 = vmatprep.subr.mxu0 0.0
    %2452 = vmatpush1.msra.mxu0 %v2434
    %2453 = vmatprep.subr.mxu0 0.0
    %2454 = vmatpush1.msra.mxu0 %v2435
    %2455 = vmatprep.subr.mxu0 0.0
    %2456 = vmatpush1.msra.mxu0 %v2436
    %2457 = vmatprep.subr.mxu0 0.0
    %2458 = vmatpush1.msra.mxu0 %v2437
    %2459 = vmatprep.subr.mxu0 0.0
    %2460 = vmatpush1.msra.mxu0 %v2438
    %2461 = vmatprep.subr.mxu0 0.0
    %2462 = vmatpush1.msra.mxu0 %v2439
    %2463 = vmatprep.subr.mxu0 0.0
    %2464 = vmatpush1.msra.mxu0 %v2440
    %2465 = vmatprep.subr.mxu0 0.0
    %2466 = vmatpush1.msra.mxu0 %v2441
    %2467 = vmatprep.subr.mxu0 0.0
    %2468 = vmatpush1.msra.mxu0 %v2442
    %2469 = vmatprep.subr.mxu0 0.0
    %2470 = vmatpush1.msra.mxu0 %v2443
    %2471 = vmatprep.subr.mxu0 0.0
    %2472 = vmatpush1.msra.mxu0 %v2444
    %2473 = vmatprep.subr.mxu0 0.0
    %2474 = vmatpush1.msra.mxu0 %v2445
    %2475 = vmatprep.subr.mxu0 0.0
    %2476 = vmatpush1.msra.mxu0 %v2446
    %2477 = vmatprep.subr.mxu0 0.0
    %2478 = vmatpush1.msra.mxu0 %v2447
    %2479 = vmatprep.subr.mxu0 0.0
    %2480 = vmatpush1.msra.mxu0 %v2448
    %2481 = vmatprep.subr.mxu0 0.0
    %2482 = vmatpush1.msra.mxu0 0.0
    %2483 = vmatprep.subr.mxu0 0.0
    %2484 = vmatpush1.msra.mxu0 0.0
    %2485 = vmatprep.subr.mxu0 0.0
    %2486 = vmatpush1.msra.mxu0 0.0
    %2487 = vmatprep.subr.mxu0 0.0
    %2488 = vmatpush1.msra.mxu0 0.0
    %2489 = vmatprep.subr.mxu0 0.0
    %2490 = vmatpush1.msra.mxu0 0.0
    %2491 = vmatprep.subr.mxu0 0.0
    %2492 = vmatpush1.msra.mxu0 0.0
    %2493 = vmatprep.subr.mxu0 0.0
    %2494 = vmatpush1.msra.mxu0 0.0
    %2495 = vmatprep.subr.mxu0 0.0
    %2496 = vmatpush1.msra.mxu0 0.0
    %2497 = vmatprep.subr.mxu0 0.0
    %2498 = vmatpush1.msra.mxu0 0.0
    %2499 = vmatprep.subr.mxu0 0.0
    %2500 = vmatpush1.msra.mxu0 0.0
    %2501 = vmatprep.subr.mxu0 0.0
    %2502 = vmatpush1.msra.mxu0 0.0
    %2503 = vmatprep.subr.mxu0 0.0
    %2504 = vmatpush1.msra.mxu0 0.0
    %2505 = vmatprep.subr.mxu0 0.0
    %2506 = vmatpush1.msra.mxu0 0.0
    %2507 = vmatprep.subr.mxu0 0.0
    %2508 = vmatpush1.msra.mxu0 0.0
    %2509 = vmatprep.subr.mxu0 0.0
    %2510 = vmatpush1.msra.mxu0 0.0
    %2511 = vmatprep.subr.mxu0 0.0
    %2512 = vmatpush1.msra.mxu0 0.0
    %2513 = vmatprep.mubr.f32.mxu0 0.0
    %2514 = vmatmul.mubr.f32.gmra.mrb[0].mxu0 %v271
    %v2515 = vpop.f32.mrb[0].mxu0
    %v2516 = vadd.f32 0.0, %v2515
    %v2517 = vpop.f32.mrb[0].mxu0
    %2518 = vdwg.mxu0
    %s2519 = scalar_lea.vmem [#allocation3], 448
    %v2520 = vld [vmem:[%s2519] sm:$0xf]
    %v2521 = vld [vmem:[%s2519 + $0x4] sm:$0xf]
    %v2522 = vld [vmem:[%s2519 + $0x8] sm:$0xf]
    %v2523 = vld [vmem:[%s2519 + $0xc] sm:$0xf]
    %v2524 = vld [vmem:[%s2519 + $0x10] sm:$0xf]
    %v2525 = vld [vmem:[%s2519 + $0x14] sm:$0xf]
    %v2526 = vld [vmem:[%s2519 + $0x18] sm:$0xf]
    %v2527 = vld [vmem:[%s2519 + $0x1c] sm:$0xf]
    %v2528 = vld [vmem:[%s2519 + $0x20] sm:$0xf]
    %v2529 = vld [vmem:[%s2519 + $0x24] sm:$0xf]
    %v2530 = vld [vmem:[%s2519 + $0x28] sm:$0xf]
    %v2531 = vld [vmem:[%s2519 + $0x2c] sm:$0xf]
    %v2532 = vld [vmem:[%s2519 + $0x30] sm:$0xf]
    %v2533 = vld [vmem:[%s2519 + $0x34] sm:$0xf]
    %v2534 = vld [vmem:[%s2519 + $0x38] sm:$0xf]
    %v2535 = vld [vmem:[%s2519 + $0x3c] sm:$0xf]
    %2536 = vset.pattern.permute.xlu0 7
    %2537 = vperm.xlu0 %2536, %v239
    %v2538 = vpop.permute.xlu0 %2537
    %2540 = vset.pattern.permute.xlu0 7
    %2541 = vperm.xlu0 %2540, %v240
    %v2542 = vpop.permute.xlu0 %2541
    %2544 = vset.pattern.permute.xlu0 7
    %2545 = vperm.xlu0 %2544, %v241
    %v2546 = vpop.permute.xlu0 %2545
    %2548 = vset.pattern.permute.xlu0 7
    %2549 = vperm.xlu0 %2548, %v242
    %v2550 = vpop.permute.xlu0 %2549
    %2552 = vset.pattern.permute.xlu0 7
    %2553 = vperm.xlu0 %2552, %v243
    %v2554 = vpop.permute.xlu0 %2553
    %2556 = vset.pattern.permute.xlu0 7
    %2557 = vperm.xlu0 %2556, %v244
    %v2558 = vpop.permute.xlu0 %2557
    %2560 = vset.pattern.permute.xlu0 7
    %2561 = vperm.xlu0 %2560, %v245
    %v2562 = vpop.permute.xlu0 %2561
    %2564 = vset.pattern.permute.xlu0 7
    %2565 = vperm.xlu0 %2564, %v246
    %v2566 = vpop.permute.xlu0 %2565
    %2568 = vset.pattern.permute.xlu0 7
    %2569 = vperm.xlu0 %2568, %v247
    %v2570 = vpop.permute.xlu0 %2569
    %2572 = vset.pattern.permute.xlu0 7
    %2573 = vperm.xlu0 %2572, %v248
    %v2574 = vpop.permute.xlu0 %2573
    %2576 = vset.pattern.permute.xlu0 7
    %2577 = vperm.xlu0 %2576, %v249
    %v2578 = vpop.permute.xlu0 %2577
    %2580 = vset.pattern.permute.xlu0 7
    %2581 = vperm.xlu0 %2580, %v250
    %v2582 = vpop.permute.xlu0 %2581
    %2584 = vset.pattern.permute.xlu0 7
    %2585 = vperm.xlu0 %2584, %v251
    %v2586 = vpop.permute.xlu0 %2585
    %2588 = vset.pattern.permute.xlu0 7
    %2589 = vperm.xlu0 %2588, %v252
    %v2590 = vpop.permute.xlu0 %2589
    %2592 = vset.pattern.permute.xlu0 7
    %2593 = vperm.xlu0 %2592, %v253
    %v2594 = vpop.permute.xlu0 %2593
    %2596 = vset.pattern.permute.xlu0 7
    %2597 = vperm.xlu0 %2596, %v254
    %v2598 = vpop.permute.xlu0 %2597
    %v2616 = vunpack.c.l.b16 %v2520
    %v2617 = vunpack.c.l.b16 %v2521
    %v2618 = vunpack.c.l.b16 %v2522
    %v2619 = vunpack.c.l.b16 %v2523
    %v2620 = vunpack.c.l.b16 %v2524
    %v2621 = vunpack.c.l.b16 %v2525
    %v2622 = vunpack.c.l.b16 %v2526
    %v2623 = vunpack.c.l.b16 %v2527
    %v2624 = vunpack.c.l.b16 %v2528
    %v2625 = vunpack.c.l.b16 %v2529
    %v2626 = vunpack.c.l.b16 %v2530
    %v2627 = vunpack.c.l.b16 %v2531
    %v2628 = vunpack.c.l.b16 %v2532
    %v2629 = vunpack.c.l.b16 %v2533
    %v2630 = vunpack.c.l.b16 %v2534
    %v2631 = vunpack.c.l.b16 %v2535
    %v2632 = vpack.c.b16 %v2617, %v2616
    %v2633 = vpack.c.b16 %v2619, %v2618
    %v2634 = vpack.c.b16 %v2621, %v2620
    %v2635 = vpack.c.b16 %v2623, %v2622
    %v2636 = vpack.c.b16 %v2625, %v2624
    %v2637 = vpack.c.b16 %v2627, %v2626
    %v2638 = vpack.c.b16 %v2629, %v2628
    %v2639 = vpack.c.b16 %v2631, %v2630
    %2648 = vmatprep.subr.bf16.mxu0 0
    %2649 = vmatpush1.bf16.msra.mxu0 %v2632
    %2650 = vmatprep.subr.bf16.mxu0 0
    %2651 = vmatpush1.bf16.msra.mxu0 %v2633
    %2652 = vmatprep.subr.bf16.mxu0 0
    %2653 = vmatpush1.bf16.msra.mxu0 %v2634
    %2654 = vmatprep.subr.bf16.mxu0 0
    %2655 = vmatpush1.bf16.msra.mxu0 %v2635
    %2656 = vmatprep.subr.bf16.mxu0 0
    %2657 = vmatpush1.bf16.msra.mxu0 %v2636
    %2658 = vmatprep.subr.bf16.mxu0 0
    %2659 = vmatpush1.bf16.msra.mxu0 %v2637
    %2660 = vmatprep.subr.bf16.mxu0 0
    %2661 = vmatpush1.bf16.msra.mxu0 %v2638
    %2662 = vmatprep.subr.bf16.mxu0 0
    %2663 = vmatpush1.bf16.msra.mxu0 %v2639
    %2664 = vmatprep.subr.bf16.mxu0 0
    %2665 = vmatpush1.bf16.msra.mxu0 0
    %2666 = vmatprep.subr.bf16.mxu0 0
    %2667 = vmatpush1.bf16.msra.mxu0 0
    %2668 = vmatprep.subr.bf16.mxu0 0
    %2669 = vmatpush1.bf16.msra.mxu0 0
    %2670 = vmatprep.subr.bf16.mxu0 0
    %2671 = vmatpush1.bf16.msra.mxu0 0
    %2672 = vmatprep.subr.bf16.mxu0 0
    %2673 = vmatpush1.bf16.msra.mxu0 0
    %2674 = vmatprep.subr.bf16.mxu0 0
    %2675 = vmatpush1.bf16.msra.mxu0 0
    %2676 = vmatprep.subr.bf16.mxu0 0
    %2677 = vmatpush1.bf16.msra.mxu0 0
    %2678 = vmatprep.subr.bf16.mxu0 0
    %2679 = vmatpush1.bf16.msra.mxu0 0
    %2680 = vmatprep.mubr.bf16.mxu0 0
    %2681 = vmatmul.mubr.bf16.gmra.mrb[0].mxu0 %v400
    %v2682 = vpop.f32.mrb[0].mxu0
    %v2683 = vadd.f32 %v2538, %v2682
    %v2684 = vpop.f32.mrb[0].mxu0
    %v2685 = vpop.f32.mrb[0].mxu0
    %v2686 = vadd.f32 %v2542, %v2685
    %v2687 = vpop.f32.mrb[0].mxu0
    %2688 = vmatprep.mubr.bf16.mxu0 0
    %2689 = vmatmul.mubr.bf16.gmra.mrb[0].mxu0 %v401
    %v2690 = vpop.f32.mrb[0].mxu0
    %v2691 = vadd.f32 %v2546, %v2690
    %v2692 = vpop.f32.mrb[0].mxu0
    %v2693 = vpop.f32.mrb[0].mxu0
    %v2694 = vadd.f32 %v2550, %v2693
    %v2695 = vpop.f32.mrb[0].mxu0
    %2696 = vmatprep.mubr.bf16.mxu0 0
    %2697 = vmatmul.mubr.bf16.gmra.mrb[0].mxu0 %v402
    %v2698 = vpop.f32.mrb[0].mxu0
    %v2699 = vadd.f32 %v2554, %v2698
    %v2700 = vpop.f32.mrb[0].mxu0
    %v2701 = vpop.f32.mrb[0].mxu0
    %v2702 = vadd.f32 %v2558, %v2701
    %v2703 = vpop.f32.mrb[0].mxu0
    %2704 = vmatprep.mubr.bf16.mxu0 0
    %2705 = vmatmul.mubr.bf16.gmra.mrb[0].mxu0 %v403
    %v2706 = vpop.f32.mrb[0].mxu0
    %v2707 = vadd.f32 %v2562, %v2706
    %v2708 = vpop.f32.mrb[0].mxu0
    %v2709 = vpop.f32.mrb[0].mxu0
    %v2710 = vadd.f32 %v2566, %v2709
    %v2711 = vpop.f32.mrb[0].mxu0
    %2712 = vmatprep.mubr.bf16.mxu0 0
    %2713 = vmatmul.mubr.bf16.gmra.mrb[0].mxu0 %v404
    %v2714 = vpop.f32.mrb[0].mxu0
    %v2715 = vadd.f32 %v2570, %v2714
    %v2716 = vpop.f32.mrb[0].mxu0
    %v2717 = vpop.f32.mrb[0].mxu0
    %v2718 = vadd.f32 %v2574, %v2717
    %v2719 = vpop.f32.mrb[0].mxu0
    %2720 = vmatprep.mubr.bf16.mxu0 0
    %2721 = vmatmul.mubr.bf16.gmra.mrb[0].mxu0 %v405
    %v2722 = vpop.f32.mrb[0].mxu0
    %v2723 = vadd.f32 %v2578, %v2722
    %v2724 = vpop.f32.mrb[0].mxu0
    %v2725 = vpop.f32.mrb[0].mxu0
    %v2726 = vadd.f32 %v2582, %v2725
    %v2727 = vpop.f32.mrb[0].mxu0
    %2728 = vmatprep.mubr.bf16.mxu0 0
    %2729 = vmatmul.mubr.bf16.gmra.mrb[0].mxu0 %v406
    %v2730 = vpop.f32.mrb[0].mxu0
    %v2731 = vadd.f32 %v2586, %v2730
    %v2732 = vpop.f32.mrb[0].mxu0
    %v2733 = vpop.f32.mrb[0].mxu0
    %v2734 = vadd.f32 %v2590, %v2733
    %v2735 = vpop.f32.mrb[0].mxu0
    %2736 = vmatprep.mubr.bf16.mxu0 0
    %2737 = vmatmul.mubr.bf16.gmra.mrb[0].mxu0 %v407
    %v2738 = vpop.f32.mrb[0].mxu0
    %v2739 = vadd.f32 %v2594, %v2738
    %v2740 = vpop.f32.mrb[0].mxu0
    %v2741 = vpop.f32.mrb[0].mxu0
    %v2742 = vadd.f32 %v2598, %v2741
    %v2743 = vpop.f32.mrb[0].mxu0
    %2744 = vdwg.mxu0
    %v2745 = vtanh.pop %v2683
    %v2746 = vtanh.pop %v2686
    %v2747 = vtanh.pop %v2691
    %v2748 = vtanh.pop %v2694
    %v2749 = vtanh.pop %v2699
    %v2750 = vtanh.pop %v2702
    %v2751 = vtanh.pop %v2707
    %v2752 = vtanh.pop %v2710
    %v2753 = vtanh.pop %v2715
    %v2754 = vtanh.pop %v2718
    %v2755 = vtanh.pop %v2723
    %v2756 = vtanh.pop %v2726
    %v2757 = vtanh.pop %v2731
    %v2758 = vtanh.pop %v2734
    %v2759 = vtanh.pop %v2739
    %v2760 = vtanh.pop %v2742
    %2761 = vmatprep.subr.mxu0 0.0
    %2762 = vmatpush1.msra.mxu0 %v2745
    %2763 = vmatprep.subr.mxu0 0.0
    %2764 = vmatpush1.msra.mxu0 %v2746
    %2765 = vmatprep.subr.mxu0 0.0
    %2766 = vmatpush1.msra.mxu0 %v2747
    %2767 = vmatprep.subr.mxu0 0.0
    %2768 = vmatpush1.msra.mxu0 %v2748
    %2769 = vmatprep.subr.mxu0 0.0
    %2770 = vmatpush1.msra.mxu0 %v2749
    %2771 = vmatprep.subr.mxu0 0.0
    %2772 = vmatpush1.msra.mxu0 %v2750
    %2773 = vmatprep.subr.mxu0 0.0
    %2774 = vmatpush1.msra.mxu0 %v2751
    %2775 = vmatprep.subr.mxu0 0.0
    %2776 = vmatpush1.msra.mxu0 %v2752
    %2777 = vmatprep.subr.mxu0 0.0
    %2778 = vmatpush1.msra.mxu0 %v2753
    %2779 = vmatprep.subr.mxu0 0.0
    %2780 = vmatpush1.msra.mxu0 %v2754
    %2781 = vmatprep.subr.mxu0 0.0
    %2782 = vmatpush1.msra.mxu0 %v2755
    %2783 = vmatprep.subr.mxu0 0.0
    %2784 = vmatpush1.msra.mxu0 %v2756
    %2785 = vmatprep.subr.mxu0 0.0
    %2786 = vmatpush1.msra.mxu0 %v2757
    %2787 = vmatprep.subr.mxu0 0.0
    %2788 = vmatpush1.msra.mxu0 %v2758
    %2789 = vmatprep.subr.mxu0 0.0
    %2790 = vmatpush1.msra.mxu0 %v2759
    %2791 = vmatprep.subr.mxu0 0.0
    %2792 = vmatpush1.msra.mxu0 %v2760
    %2793 = vmatprep.subr.mxu0 0.0
    %2794 = vmatpush1.msra.mxu0 0.0
    %2795 = vmatprep.subr.mxu0 0.0
    %2796 = vmatpush1.msra.mxu0 0.0
    %2797 = vmatprep.subr.mxu0 0.0
    %2798 = vmatpush1.msra.mxu0 0.0
    %2799 = vmatprep.subr.mxu0 0.0
    %2800 = vmatpush1.msra.mxu0 0.0
    %2801 = vmatprep.subr.mxu0 0.0
    %2802 = vmatpush1.msra.mxu0 0.0
    %2803 = vmatprep.subr.mxu0 0.0
    %2804 = vmatpush1.msra.mxu0 0.0
    %2805 = vmatprep.subr.mxu0 0.0
    %2806 = vmatpush1.msra.mxu0 0.0
    %2807 = vmatprep.subr.mxu0 0.0
    %2808 = vmatpush1.msra.mxu0 0.0
    %2809 = vmatprep.subr.mxu0 0.0
    %2810 = vmatpush1.msra.mxu0 0.0
    %2811 = vmatprep.subr.mxu0 0.0
    %2812 = vmatpush1.msra.mxu0 0.0
    %2813 = vmatprep.subr.mxu0 0.0
    %2814 = vmatpush1.msra.mxu0 0.0
    %2815 = vmatprep.subr.mxu0 0.0
    %2816 = vmatpush1.msra.mxu0 0.0
    %2817 = vmatprep.subr.mxu0 0.0
    %2818 = vmatpush1.msra.mxu0 0.0
    %2819 = vmatprep.subr.mxu0 0.0
    %2820 = vmatpush1.msra.mxu0 0.0
    %2821 = vmatprep.subr.mxu0 0.0
    %2822 = vmatpush1.msra.mxu0 0.0
    %2823 = vmatprep.subr.mxu0 0.0
    %2824 = vmatpush1.msra.mxu0 0.0
    %2825 = vmatprep.mubr.f32.mxu0 0.0
    %2826 = vmatmul.mubr.f32.gmra.mrb[0].mxu0 %v271
    %v2827 = vpop.f32.mrb[0].mxu0
    %v2828 = vadd.f32 0.0, %v2827
    %v2829 = vpop.f32.mrb[0].mxu0
    %2830 = vdwg.mxu0
    %v2832 = vrot.slane %v956, 7
    %v2835 = vrot.slane %v1268, 6
    %v2838 = vrot.slane %v1580, 5
    %v2841 = vrot.slane %v1892, 4
    %v2844 = vrot.slane %v2204, 3
    %v2847 = vrot.slane %v2516, 2
    %v2850 = vrot.slane %v2828, 1
    %vm2852 = vcmask 1040384
    %v2853 = vsel %vm2852, %v644, %v2832
    %vm2854 = vcmask 1041408
    %v2855 = vsel %vm2854, %v2853, %v2835
    %vm2856 = vcmask 1042432
    %v2857 = vsel %vm2856, %v2855, %v2838
    %vm2858 = vcmask 1043456
    %v2859 = vsel %vm2858, %v2857, %v2841
    %vm2860 = vcmask 1044480
    %v2861 = vsel %vm2860, %v2859, %v2844
    %vm2862 = vcmask 1045504
    %v2863 = vsel %vm2862, %v2861, %v2847
    %vm2864 = vcmask 1046528
    %v2865 = vsel %vm2864, %v2863, %v2850
    %s2866 = smul.u32 0, 128
    %s2867 = sshra.s32 %s2866, 7
    %s2868 = sand.u32 %s2866, 127
    %s2869 = scalar_lea.vmem [#allocation12], %s2867
    %2870 = vst [vmem:[%s2869] sm:$0xff] %v2865
    // Predicated region
    $region54: #{tpu_custom_call.1} parent=1 // pred_check
      %p2871 = pneg %p92
    $region55: #{tpu_custom_call.1} parent=1 // pred_check_branch
      %2873 = sbr.rel (%p2871) target = $region57
    $region56: #{tpu_custom_call.1} parent=1 // pred_region
      %v2874 = vld [vmem:[#allocation12] sm:$0xff]
      %v2875 = vld [vmem:[#allocation8] sm:$0xff]
      %vm2876 = vcmp.gt.f32.partialorder %v2875, 0.0
      %v2877 = vsel %vm2876, %v2874, -1e+30
      %2878 = vmax.xlane.f32.xlu0 %v2877
      %v2879 = vpop.xlane.xlu0 %2878
      %v2880 = vsub.f32 %v2877, %v2879
      %v2881 = vmul.f32 %v2880, 1.442695
      %v2882 = vpow.pop %v2881
      %v2883 = vsel %vm2876, 1, 0
      %v2884 = vcvt.s32.f32 %v2883
      %v2885 = vmul.f32 %v2882, %v2884
      %2886 = vadd.xlane.f32.xlu0 %v2885
      %v2887 = vpop.xlane.xlu0 %2886
      %v2888 = vmax.f32 %v2887, 1e-30
      %v2889 = vrcp.pop %v2888
      %v2890 = vmul.f32 %v2885, %v2889
      %2891 = vst [vmem:[#allocation12] sm:$0xff] %v2890
    $region57: #{tpu_custom_call.1} parent=1 // pred_fallthru
      _
    // Predicated region
    $region58: #{tpu_custom_call.1} parent=1 // pred_check
      _
    $region59: #{tpu_custom_call.1} parent=1 // pred_check_branch
      %2893 = sbr.rel (0) target = $region61
    $region60: #{tpu_custom_call.1} parent=1 // pred_region
      %s2895 = ssub.s32 128, 128
      %2896 = vsyncadd [#allocation5], %s2895
      %s2898 = sshll.u32 [#allocation12], 4
      %s2899 = int_to_ptr.vmem [resolvable:$true] %s2898
      %2901 = dma.vmem_to_hbm [thread:$0]  %s2899, 128, %s7, [#allocation5]
    $region61: #{tpu_custom_call.1} parent=1 // pred_fallthru
      _
    // Predicated region
    $region62: #{tpu_custom_call.1} parent=1 // pred_check
      _
    $region63: #{tpu_custom_call.1} parent=1 // pred_check_branch
      %2903 = sbr.rel (0) target = $region65
    $region64: #{tpu_custom_call.1} parent=1 // pred_region
      %2904 = dma.done [#allocation5], 128
    $region65: #{tpu_custom_call.1} parent=1 // pred_fallthru
      _
    %2905 = vsyncpa [#allocation4], 1
    %2906 = vsyncpa [#allocation7], 1
    %2907 = vsyncpa [#allocation10], 1
    %2908 = vsyncpa [#allocation5], 1

</llo_original>
